<compile_context>
chip_gen: v5e
topology: v5e:2x2
jax: 0.10.0
libtpu: 0.0.40
codegen_flags: <defaults>
</compile_context>

<pallas_src>
import math

import jax
import jax.numpy as jnp
from jax.experimental import pallas as pl
from jax.experimental.pallas import tpu as pltpu


# ----------------------------------------------------------------------------
# Fused kernel: one (C, T_pix) pixel tile of the whole GatedSpatailConv2d forward.
# ----------------------------------------------------------------------------
def _gated_kernel(x_ref, g_ref, w1_ref, aux_ref, w3_ref, o_ref):
    C = x_ref.shape[0]
    hi = jax.lax.Precision.HIGHEST

    x = x_ref[...]                                   # (C,   T) f32, pixels on lanes
    g = g_ref[...]                                   # (1,   T) f32
    aux = aux_ref[...]                               # (C+1, 8) packed small operands
    w1g = aux[:, 0:1]                                # (C+1, 1) gate-channel column of conv1^T
    b1 = aux[:, 1:2]                                 # (C+1, 1) folded BN1+conv1 bias
    w2 = aux[:, 2:3]                                 # (C+1, 1) folded conv2+BN2 weights
    b3 = aux[:C, 3:4]                                # (C,   1) conv3 bias
    b2 = aux[0:1, 4:5]                               # (1,   1) folded conv2+BN2 bias

    # Gate path: BN1 + 1x1 conv (C+1 -> C+1); the concat's gating channel is the
    # rank-1 broadcast term w1g * g.  MXU matmul, f32 operands, HIGHEST precision.
    h = jnp.dot(w1_ref[...], x, preferred_element_type=jnp.float32, precision=hi)
    h = jnp.maximum(h + w1g * g + b1, 0.0)           # (C+1, T)  ReLU

    # 1x1 conv (C+1 -> 1) + BN2 as a VPU multiply + sublane reduction.
    a = jnp.sum(h * w2, axis=0, keepdims=True) + b2  # (1, T)
    att = jax.nn.sigmoid(a)

    # input_features * (attention + 1), then final 1x1 conv (C -> C) with bias.
    xg = x * (att + 1.0)                             # (C, T)
    out = jnp.dot(w3_ref[...], xg, preferred_element_type=jnp.float32, precision=hi)
    o_ref[...] = out + b3                            # lane-dense store (T % 128 == 0)


# ----------------------------------------------------------------------------
# Wrapper: NCHW in/out (PyTorch layout) viewed as (N, C, H*W) — no transposes.
# ----------------------------------------------------------------------------
def gated_spatial_conv2d(input_nchw, gating_nchw, fp, *, tpix=8192, interpret=False):
    N, C, H, W = input_nchw.shape
    Cp1 = C + 1
    HW = H * W

    x = input_nchw.reshape(N, C, HW)                 # pure view of NCHW layout
    g = gating_nchw.reshape(N, 1, HW)

    # Pixel tile: large (amortizes per-step overhead), multiple of 128, <= padded HW.
    t = max(128, min(int(tpix), HW))
    t = ((t + 127) // 128) * 128
    HWp = pl.cdiv(HW, t) * t
    if HWp != HW:                                    # pointwise op -> zero-pad pixels
        x = jnp.pad(x, ((0, 0), (0, 0), (0, HWp - HW)))
        g = jnp.pad(g, ((0, 0), (0, 0), (0, HWp - HW)))

    pix_spec = pl.BlockSpec((None, C, t), lambda n, i: (n, 0, i))
    gat_spec = pl.BlockSpec((None, 1, t), lambda n, i: (n, 0, i))

    out = pl.pallas_call(
        _gated_kernel,
        out_shape=jax.ShapeDtypeStruct((N, C, HWp), jnp.float32),
        grid=(N, HWp // t),
        in_specs=[
            pix_spec,                                        # x    (C, T) tile
            gat_spec,                                        # g    (1, T) tile
            pl.BlockSpec((Cp1, C), lambda n, i: (0, 0)),     # w1   folded (conv1∘BN1)^T, x part
            pl.BlockSpec((Cp1, 8), lambda n, i: (0, 0)),     # aux  packed small operands
            pl.BlockSpec((C, C), lambda n, i: (0, 0)),       # w3   conv3^T
        ],
        out_specs=pix_spec,
        compiler_params=pltpu.CompilerParams(
            dimension_semantics=("parallel", "parallel"),
            vmem_limit_bytes=48 * 1024 * 1024,
        ),
        interpret=interpret,
    )(x, g, fp["w1"], fp["aux"], fp["w3"])

    return out[:, :, :HW].reshape(N, C, H, W)


# ----------------------------------------------------------------------------
# Parameter construction (synthetic, deterministic) and BatchNorm folding.
# ----------------------------------------------------------------------------
def init_params(key, channels):
    C = channels
    ks = jax.random.split(key, 14)
    nrm = lambda k, shape: jax.random.normal(k, shape, jnp.float32)
    return {
        # _gate_conv[0] : BatchNorm2d(C + 1)          (inference-mode running stats)
        "bn1_gamma": 1.0 + 0.1 * nrm(ks[0], (C + 1,)),
        "bn1_beta":  0.1 * nrm(ks[1], (C + 1,)),
        "bn1_mean":  0.1 * nrm(ks[2], (C + 1,)),
        "bn1_var":   1.0 + 0.1 * jax.random.uniform(ks[3], (C + 1,), jnp.float32),
        # _gate_conv[1] : Conv2d(C + 1, C + 1, 1)     weights stored (Cin, Cout)
        "conv1_w": nrm(ks[4], (C + 1, C + 1)) / math.sqrt(C + 1),
        "conv1_b": 0.1 * nrm(ks[5], (C + 1,)),
        # _gate_conv[3] : Conv2d(C + 1, 1, 1)
        "conv2_w": nrm(ks[6], (C + 1, 1)) / math.sqrt(C + 1),
        "conv2_b": 0.1 * nrm(ks[7], (1,)),
        # _gate_conv[4] : BatchNorm2d(1)
        "bn2_gamma": 1.0 + 0.1 * nrm(ks[8], (1,)),
        "bn2_beta":  0.1 * nrm(ks[9], (1,)),
        "bn2_mean":  0.1 * nrm(ks[10], (1,)),
        "bn2_var":   1.0 + 0.1 * jax.random.uniform(ks[11], (1,), jnp.float32),
        # self.conv : Conv2d(C, C, 1)
        "conv3_w": nrm(ks[12], (C, C)) / math.sqrt(C),
        "conv3_b": 0.1 * nrm(ks[13], (C,)),
    }


def fold_params(p, *, bn_eps=1e-5):
    """Fold inference-mode BatchNorms into the adjacent 1x1 convs and pre-transpose
    weights for the channels-on-sublanes / pixels-on-lanes kernel layout."""
    C = p["conv3_w"].shape[0]
    # BN1 then conv1:  (cat*s1 + t1) @ W1 + b = cat @ (s1[:,None]*W1) + (t1@W1 + b)
    s1 = p["bn1_gamma"] * jax.lax.rsqrt(p["bn1_var"] + bn_eps)
    t1 = p["bn1_beta"] - p["bn1_mean"] * s1
    w1 = s1[:, None] * p["conv1_w"]                         # (Cin=C+1, Cout=C+1)
    b1 = t1 @ p["conv1_w"] + p["conv1_b"]                   # (C+1,)
    w1t = w1.T                                              # (Cout=C+1, Cin=C+1)
    # conv2 then BN2:  (h @ W2 + b)*s2 + t2 = h @ (W2*s2) + (b*s2 + t2)
    s2 = p["bn2_gamma"] * jax.lax.rsqrt(p["bn2_var"] + bn_eps)
    t2 = p["bn2_beta"] - p["bn2_mean"] * s2
    w2 = p["conv2_w"][:, 0] * s2[0]                         # (C+1,)
    b2 = p["conv2_b"] * s2 + t2                             # (1,)

    # Pack the five tiny per-channel operands into one (C+1, 8) f32 array.
    aux = jnp.zeros((C + 1, 8), jnp.float32)
    aux = aux.at[:, 0].set(w1t[:, C])                       # gate-channel column of conv1^T
    aux = aux.at[:, 1].set(b1)
    aux = aux.at[:, 2].set(w2)
    aux = aux.at[:C, 3].set(p["conv3_b"])
    aux = aux.at[0, 4].set(b2[0])

    return {
        "w1": w1t[:, :C],                                   # (C+1, C)  acts on x channels
        "aux": aux,                                         # (C+1, 8)  packed small operands
        "w3": p["conv3_w"].T,                               # (C,   C)  conv3^T (Cout, Cin)
    }


# ----------------------------------------------------------------------------
# Pure-JAX f32 reference of the PyTorch forward (for a correctness check).
# ----------------------------------------------------------------------------
def reference_forward(input_nchw, gating_nchw, p, *, bn_eps=1e-5):
    N, C, H, W = input_nchw.shape
    hi = jax.lax.Precision.HIGHEST
    x = jnp.transpose(input_nchw, (0, 2, 3, 1)).reshape(-1, C)
    g = jnp.transpose(gating_nchw, (0, 2, 3, 1)).reshape(-1, 1)
    cat = jnp.concatenate([x, g], axis=-1)
    y = (cat - p["bn1_mean"]) * jax.lax.rsqrt(p["bn1_var"] + bn_eps) \
        * p["bn1_gamma"] + p["bn1_beta"]
    h = jnp.maximum(jnp.dot(y, p["conv1_w"], precision=hi) + p["conv1_b"], 0.0)
    a = jnp.dot(h, p["conv2_w"], precision=hi) + p["conv2_b"]
    a = (a - p["bn2_mean"]) * jax.lax.rsqrt(p["bn2_var"] + bn_eps) \
        * p["bn2_gamma"] + p["bn2_beta"]
    att = jax.nn.sigmoid(a)
    out = jnp.dot(x * (att + 1.0), p["conv3_w"], precision=hi) + p["conv3_b"]
    return jnp.transpose(out.reshape(N, H, W, C), (0, 3, 1, 2))


if __name__ == "__main__":
    N, C, H, W = 2, 32, 16, 16                    # module default: channels=32
    kx, kg, kp = jax.random.split(jax.random.PRNGKey(0), 3)
    input_features = jax.random.normal(kx, (N, C, H, W), jnp.float32)
    gating_features = jax.random.normal(kg, (N, 1, H, W), jnp.float32)

    params = init_params(kp, C)
    folded = fold_params(params)

    out = jax.jit(gated_spatial_conv2d)(input_features, gating_features, folded)
    out = jax.block_until_ready(out)

    ref = reference_forward(input_features, gating_features, params)

    assert out.shape == (N, C, H, W)
    assert bool(jnp.all(jnp.isfinite(out)))
    # f32 operands with HIGHEST-precision MXU passes -> tight tolerance.
    assert bool(jnp.allclose(out, ref, atol=5e-3, rtol=5e-3))
    print("KERNEL_OK")
</pallas_src>

<mosaic_0001>
module attributes {stable_mosaic.version = 11 : i64} {
  func.func @_gated_kernel(%arg0: i32, %arg1: i32, %arg2: memref<1x32x256xf32, #tpu.memory_space<vmem>>, %arg3: memref<1x1x256xf32, #tpu.memory_space<vmem>>, %arg4: memref<33x32xf32, #tpu.memory_space<vmem>>, %arg5: memref<33x8xf32, #tpu.memory_space<vmem>>, %arg6: memref<32x32xf32, #tpu.memory_space<vmem>>, %arg7: memref<1x32x256xf32, #tpu.memory_space<vmem>>) attributes {dimension_semantics = [#tpu.dimension_semantics<parallel>, #tpu.dimension_semantics<parallel>], iteration_bounds = array<i64: 2, 1>, scalar_prefetch = 0 : i64, scratch_operands = 0 : i64, tpu.core_type = #tpu.core_type<tc>, window_params = [{transform_indices = @transform_0, window_bounds = array<i64: 1, 32, 256>}, {transform_indices = @transform_1, window_bounds = array<i64: 1, 1, 256>}, {pipeline_mode = #tpu.pipeline_mode<synchronous>, transform_indices = @transform_2, window_bounds = array<i64: 33, 32>}, {pipeline_mode = #tpu.pipeline_mode<synchronous>, transform_indices = @transform_3, window_bounds = array<i64: 33, 8>}, {pipeline_mode = #tpu.pipeline_mode<synchronous>, transform_indices = @transform_4, window_bounds = array<i64: 32, 32>}, {transform_indices = @transform_5, window_bounds = array<i64: 1, 32, 256>}]} {
    %c0 = arith.constant 0 : index
    %c0_0 = arith.constant 0 : index
    %c0_1 = arith.constant 0 : index
    %0 = vector.load %arg2[%c0, %c0_0, %c0_1] : memref<1x32x256xf32, #tpu.memory_space<vmem>>, vector<1x32x256xf32>
    %1 = vector.shape_cast %0 : vector<1x32x256xf32> to vector<32x256xf32>
    %c0_2 = arith.constant 0 : index
    %c0_3 = arith.constant 0 : index
    %c0_4 = arith.constant 0 : index
    %2 = vector.load %arg3[%c0_2, %c0_3, %c0_4] : memref<1x1x256xf32, #tpu.memory_space<vmem>>, vector<1x1x256xf32>
    %3 = vector.shape_cast %2 : vector<1x1x256xf32> to vector<1x256xf32>
    %c0_5 = arith.constant 0 : index
    %c0_6 = arith.constant 0 : index
    %4 = vector.load %arg5[%c0_5, %c0_6] : memref<33x8xf32, #tpu.memory_space<vmem>>, vector<33x8xf32>
    %5 = vector.extract_strided_slice %4 {offsets = [0, 0], sizes = [33, 1], strides = [1, 1]} : vector<33x8xf32> to vector<33x1xf32>
    %6 = vector.extract_strided_slice %4 {offsets = [0, 1], sizes = [33, 1], strides = [1, 1]} : vector<33x8xf32> to vector<33x1xf32>
    %7 = vector.extract_strided_slice %4 {offsets = [0, 2], sizes = [33, 1], strides = [1, 1]} : vector<33x8xf32> to vector<33x1xf32>
    %8 = vector.extract_strided_slice %4 {offsets = [0, 3], sizes = [32, 1], strides = [1, 1]} : vector<33x8xf32> to vector<32x1xf32>
    %9 = vector.extract_strided_slice %4 {offsets = [0, 4], sizes = [1, 1], strides = [1, 1]} : vector<33x8xf32> to vector<1x1xf32>
    %c0_7 = arith.constant 0 : index
    %c0_8 = arith.constant 0 : index
    %10 = vector.load %arg4[%c0_7, %c0_8] : memref<33x32xf32, #tpu.memory_space<vmem>>, vector<33x32xf32>
    %cst = arith.constant dense<0.000000e+00> : vector<33x256xf32>
    %11 = tpu.matmul %10, %1, %cst {dimension_numbers = #tpu.dot_dimension_numbers<[1], [0], [0], [1], [0, 0, 1, 1], [], []>, precision = #tpu.contract_precision<fp32>} : vector<33x32xf32>, vector<32x256xf32>, vector<33x256xf32> -> vector<33x256xf32>
    %12 = vector.broadcast %5 : vector<33x1xf32> to vector<33x256xf32>
    %13 = vector.broadcast %3 : vector<1x256xf32> to vector<33x256xf32>
    %14 = arith.mulf %12, %13 : vector<33x256xf32>
    %15 = arith.addf %11, %14 : vector<33x256xf32>
    %16 = vector.broadcast %6 : vector<33x1xf32> to vector<33x256xf32>
    %17 = arith.addf %15, %16 : vector<33x256xf32>
    %cst_9 = arith.constant 0.000000e+00 : f32
    %18 = vector.broadcast %cst_9 : f32 to vector<33x256xf32>
    %19 = arith.maximumf %17, %18 : vector<33x256xf32>
    %20 = vector.broadcast %7 : vector<33x1xf32> to vector<33x256xf32>
    %21 = arith.mulf %19, %20 : vector<33x256xf32>
    %cst_10 = arith.constant dense<0.000000e+00> : vector<256xf32>
    %22 = vector.multi_reduction <add>, %21, %cst_10 [0] : vector<33x256xf32> to vector<256xf32>
    %23 = vector.shape_cast %22 : vector<256xf32> to vector<1x256xf32>
    %24 = vector.broadcast %9 : vector<1x1xf32> to vector<1x256xf32>
    %25 = arith.addf %23, %24 : vector<1x256xf32>
    %26 = arith.negf %25 : vector<1x256xf32>
    %27 = math.exp %26 : vector<1x256xf32>
    %cst_11 = arith.constant 1.000000e+00 : f32
    %28 = vector.broadcast %cst_11 : f32 to vector<1x256xf32>
    %29 = arith.addf %28, %27 : vector<1x256xf32>
    %30 = arith.divf %28, %29 : vector<1x256xf32>
    %cst_12 = arith.constant 1.000000e+00 : f32
    %31 = vector.broadcast %cst_12 : f32 to vector<1x256xf32>
    %32 = arith.addf %30, %31 : vector<1x256xf32>
    %33 = vector.broadcast %32 : vector<1x256xf32> to vector<32x256xf32>
    %34 = arith.mulf %1, %33 : vector<32x256xf32>
    %c0_13 = arith.constant 0 : index
    %c0_14 = arith.constant 0 : index
    %35 = vector.load %arg6[%c0_13, %c0_14] : memref<32x32xf32, #tpu.memory_space<vmem>>, vector<32x32xf32>
    %cst_15 = arith.constant dense<0.000000e+00> : vector<32x256xf32>
    %36 = tpu.matmul %35, %34, %cst_15 {dimension_numbers = #tpu.dot_dimension_numbers<[1], [0], [0], [1], [0, 0, 1, 1], [], []>, precision = #tpu.contract_precision<fp32>} : vector<32x32xf32>, vector<32x256xf32>, vector<32x256xf32> -> vector<32x256xf32>
    %37 = vector.broadcast %8 : vector<32x1xf32> to vector<32x256xf32>
    %38 = arith.addf %36, %37 : vector<32x256xf32>
    %c0_16 = arith.constant 0 : index
    %c0_17 = arith.constant 0 : index
    %c0_18 = arith.constant 0 : index
    %39 = vector.load %arg7[%c0_16, %c0_17, %c0_18] : memref<1x32x256xf32, #tpu.memory_space<vmem>>, vector<1x32x256xf32>
    %40 = vector.shape_cast %39 : vector<1x32x256xf32> to vector<32x256xf32>
    %41 = vector.shape_cast %38 : vector<32x256xf32> to vector<1x32x256xf32>
    tpu.vector_store %arg7[%c0_16, %c0_17, %c0_18], %41 {strides = array<i32>} : memref<1x32x256xf32, #tpu.memory_space<vmem>>, vector<1x32x256xf32>,
    return
  }
  func.func @transform_0(%arg0: i32, %arg1: i32) -> (i32, i32, i32) {
    %c0_i32 = arith.constant 0 : i32
    %c0_i32_0 = arith.constant 0 : i32
    return %arg0, %c0_i32, %arg1 : i32, i32, i32
  }
  func.func @transform_1(%arg0: i32, %arg1: i32) -> (i32, i32, i32) {
    %c0_i32 = arith.constant 0 : i32
    %c0_i32_0 = arith.constant 0 : i32
    return %arg0, %c0_i32, %arg1 : i32, i32, i32
  }
  func.func @transform_2(%arg0: i32, %arg1: i32) -> (i32, i32) {
    %c0_i32 = arith.constant 0 : i32
    %c0_i32_0 = arith.constant 0 : i32
    %c0_i32_1 = arith.constant 0 : i32
    return %c0_i32, %c0_i32_0 : i32, i32
  }
  func.func @transform_3(%arg0: i32, %arg1: i32) -> (i32, i32) {
    %c0_i32 = arith.constant 0 : i32
    %c0_i32_0 = arith.constant 0 : i32
    %c0_i32_1 = arith.constant 0 : i32
    return %c0_i32, %c0_i32_0 : i32, i32
  }
  func.func @transform_4(%arg0: i32, %arg1: i32) -> (i32, i32) {
    %c0_i32 = arith.constant 0 : i32
    %c0_i32_0 = arith.constant 0 : i32
    %c0_i32_1 = arith.constant 0 : i32
    return %c0_i32, %c0_i32_0 : i32, i32
  }
  func.func @transform_5(%arg0: i32, %arg1: i32) -> (i32, i32, i32) {
    %c0_i32 = arith.constant 0 : i32
    %c0_i32_0 = arith.constant 0 : i32
    return %arg0, %c0_i32, %arg1 : i32, i32, i32
  }
}

</mosaic_0001>

<llo_original>
// kernel: gated_spatial_conv2d.1
$region0: #{gated_spatial_conv2d.1}
  #allocation0 [shape = 'u32[]', space=smem, size = 0x4, offset = 0x4, fixed_abs, tag = 'smem constant byte address 0x4 - core index']
  #allocation1 [shape = 'u32[72,128]{1,0:T(1,128)}', space=vmem, size = 0x9000, scoped, tag = 'internal scratch']
  %s0 = inlined_call_operand.vmem [shape: f32[2,32,256], index: 0, kind: input, shape index: {}]
  %s1 = inlined_call_operand.vmem [shape: f32[2,1,256], index: 1, kind: input, shape index: {}]
  %s2 = inlined_call_operand.vmem [shape: f32[33,32], index: 2, kind: input, shape index: {}]
  %s3 = inlined_call_operand.vmem [shape: f32[33,8], index: 3, kind: input, shape index: {}]
  %s4 = inlined_call_operand.vmem [shape: f32[32,32], index: 4, kind: input, shape index: {}]
  %s5 = inlined_call_operand.vmem [shape: f32[2,32,256], index: 5, kind: output, shape index: {}]
  %s6 = sld [smem:[#allocation0]]
  $region53: #{gated_spatial_conv2d.1} parent=0
    _
  %s8 = ssub.s32 1, %s6
  %s9 = scalar_select 0, %s8, %s6
  loop: start=0, step=1, limit=4
  $region2: #{gated_spatial_conv2d.1} parent=0 // loop_pre_header
    _
  $region3: #{gated_spatial_conv2d.1} parent=0 // loop_header
    %s11 = sphi 0, %s15
    %p12 = scmp.ge.s32.totalorder %s11, 4
    %s18 = sphi 0, %s30
    %s19 = sphi 0, %s26
    %s20 = sphi 0, %s18
    %s21 = sphi 0, %s19
    %s22 = sphi 0, %s20
    %s23 = sphi 0, %s21
    %s35 = sphi 0, %s37
    %s38 = sphi 0, %s35
    %s39 = sphi 0, %s38
    %s55 = sphi 0, %s39
    %s63 = sphi 0, %s65
    %s66 = sphi 0, %s63
    %s67 = sphi 0, %s66
    %s83 = sphi 0, %s67
    %s87 = sphi 0, %s87
    %s89 = sphi 0, %s87
    %s90 = sphi 0, %s89
    %s104 = sphi 0, %s90
    %s108 = sphi 0, %s108
    %s110 = sphi 0, %s108
    %s111 = sphi 0, %s110
    %s125 = sphi 0, %s111
    %s129 = sphi 0, %s129
    %s131 = sphi 0, %s129
    %s132 = sphi 0, %s131
    %s146 = sphi 0, %s132
    %s154 = sphi 0, %s156
    %s157 = sphi 0, %s154
    %s158 = sphi 0, %s157
    %s174 = sphi 0, %s158
  $region4: #{gated_spatial_conv2d.1} parent=0 // loop_header_branch
    %14 = sbr.rel (%p12) target = $region8
  $region5: #{gated_spatial_conv2d.1} parent=0 // loop_body
    %s16 = ssub.s32 %s11, 1
    %s17 = ssub.s32 %s11, 2
    %s24 = sadd.s32 1, %s19
    %p25 = scmp.ge.s32.totalorder %s24, 1
    %s26 = scalar_select %p25, 0, %s24
    %s27 = sadd.s32 1, %s18
    %s28 = scalar_select %p25, %s27, %s18
    %p29 = scmp.ge.s32.totalorder %s28, 2
    %s30 = scalar_select %p29, 0, %s28
    %s31 = ssub.s32 %s18, %s30
    %s32 = ssub.s32 %s19, %s26
    %s33 = sor.u32 %s31, %s32
    %p34 = scmp.eq.s32.totalorder %s33, 0
    %s36 = sadd.s32 %s35, 1
    %s37 = scalar_select %p34, %s35, %s36
    %p40 = pneg %p34
    %p41 = scmp.eq.s32.totalorder %s11, 1
    %p42 = por %p40, %p41
    %p43 = scmp.ne.s32.totalorder %s35, %s38
    %p44 = scmp.eq.s32.totalorder %s11, 0
    %p45 = por %p43, %p44
    %p46 = scmp.ne.s32.totalorder %s35, %s38
    %p47 = scmp.eq.s32.totalorder %s16, 1
    %p48 = por %p46, %p47
    %p49 = scmp.ne.s32.totalorder %s38, %s39
    %p50 = scmp.eq.s32.totalorder %s16, 0
    %p51 = por %p49, %p50
    %p52 = scmp.ne.s32.totalorder %s38, %s39
    %p53 = scmp.eq.s32.totalorder %s17, 1
    %p54 = por %p52, %p53
    %p56 = scmp.ne.s32.totalorder %s39, %s55
    %p57 = scmp.eq.s32.totalorder %s17, 0
    %p58 = por %p56, %p57
    %s59 = ssub.s32 %s18, %s30
    %s60 = ssub.s32 %s19, %s26
    %s61 = sor.u32 %s59, %s60
    %p62 = scmp.eq.s32.totalorder %s61, 0
    %s64 = sadd.s32 %s63, 1
    %s65 = scalar_select %p62, %s63, %s64
    %p68 = pneg %p62
    %p69 = scmp.eq.s32.totalorder %s11, 1
    %p70 = por %p68, %p69
    %p71 = scmp.ne.s32.totalorder %s63, %s66
    %p72 = scmp.eq.s32.totalorder %s11, 0
    %p73 = por %p71, %p72
    %p74 = scmp.ne.s32.totalorder %s63, %s66
    %p75 = scmp.eq.s32.totalorder %s16, 1
    %p76 = por %p74, %p75
    %p77 = scmp.ne.s32.totalorder %s66, %s67
    %p78 = scmp.eq.s32.totalorder %s16, 0
    %p79 = por %p77, %p78
    %p80 = scmp.ne.s32.totalorder %s66, %s67
    %p81 = scmp.eq.s32.totalorder %s17, 1
    %p82 = por %p80, %p81
    %p84 = scmp.ne.s32.totalorder %s67, %s83
    %p85 = scmp.eq.s32.totalorder %s17, 0
    %p86 = por %p84, %p85
    %s88 = sadd.s32 %s87, 1
    %p91 = scmp.eq.s32.totalorder %s11, 1
    %p92 = scmp.ne.s32.totalorder %s87, %s89
    %p93 = scmp.eq.s32.totalorder %s11, 0
    %p94 = por %p92, %p93
    %p95 = scmp.ne.s32.totalorder %s87, %s89
    %p96 = scmp.eq.s32.totalorder %s16, 1
    %p97 = por %p95, %p96
    %p98 = scmp.ne.s32.totalorder %s89, %s90
    %p99 = scmp.eq.s32.totalorder %s16, 0
    %p100 = por %p98, %p99
    %p101 = scmp.ne.s32.totalorder %s89, %s90
    %p102 = scmp.eq.s32.totalorder %s17, 1
    %p103 = por %p101, %p102
    %p105 = scmp.ne.s32.totalorder %s90, %s104
    %p106 = scmp.eq.s32.totalorder %s17, 0
    %p107 = por %p105, %p106
    %s109 = sadd.s32 %s108, 1
    %p112 = scmp.eq.s32.totalorder %s11, 1
    %p113 = scmp.ne.s32.totalorder %s108, %s110
    %p114 = scmp.eq.s32.totalorder %s11, 0
    %p115 = por %p113, %p114
    %p116 = scmp.ne.s32.totalorder %s108, %s110
    %p117 = scmp.eq.s32.totalorder %s16, 1
    %p118 = por %p116, %p117
    %p119 = scmp.ne.s32.totalorder %s110, %s111
    %p120 = scmp.eq.s32.totalorder %s16, 0
    %p121 = por %p119, %p120
    %p122 = scmp.ne.s32.totalorder %s110, %s111
    %p123 = scmp.eq.s32.totalorder %s17, 1
    %p124 = por %p122, %p123
    %p126 = scmp.ne.s32.totalorder %s111, %s125
    %p127 = scmp.eq.s32.totalorder %s17, 0
    %p128 = por %p126, %p127
    %s130 = sadd.s32 %s129, 1
    %p133 = scmp.eq.s32.totalorder %s11, 1
    %p134 = scmp.ne.s32.totalorder %s129, %s131
    %p135 = scmp.eq.s32.totalorder %s11, 0
    %p136 = por %p134, %p135
    %p137 = scmp.ne.s32.totalorder %s129, %s131
    %p138 = scmp.eq.s32.totalorder %s16, 1
    %p139 = por %p137, %p138
    %p140 = scmp.ne.s32.totalorder %s131, %s132
    %p141 = scmp.eq.s32.totalorder %s16, 0
    %p142 = por %p140, %p141
    %p143 = scmp.ne.s32.totalorder %s131, %s132
    %p144 = scmp.eq.s32.totalorder %s17, 1
    %p145 = por %p143, %p144
    %p147 = scmp.ne.s32.totalorder %s132, %s146
    %p148 = scmp.eq.s32.totalorder %s17, 0
    %p149 = por %p147, %p148
    %s150 = ssub.s32 %s18, %s30
    %s151 = ssub.s32 %s19, %s26
    %s152 = sor.u32 %s150, %s151
    %p153 = scmp.eq.s32.totalorder %s152, 0
    %s155 = sadd.s32 %s154, 1
    %s156 = scalar_select %p153, %s154, %s155
    %p159 = pneg %p153
    %p160 = scmp.eq.s32.totalorder %s11, 1
    %p161 = por %p159, %p160
    %p162 = scmp.ne.s32.totalorder %s154, %s157
    %p163 = scmp.eq.s32.totalorder %s11, 0
    %p164 = por %p162, %p163
    %p165 = scmp.ne.s32.totalorder %s154, %s157
    %p166 = scmp.eq.s32.totalorder %s16, 1
    %p167 = por %p165, %p166
    %p168 = scmp.ne.s32.totalorder %s157, %s158
    %p169 = scmp.eq.s32.totalorder %s16, 0
    %p170 = por %p168, %p169
    %p171 = scmp.ne.s32.totalorder %s157, %s158
    %p172 = scmp.eq.s32.totalorder %s17, 1
    %p173 = por %p171, %p172
    %p175 = scmp.ne.s32.totalorder %s158, %s174
    %p176 = scmp.eq.s32.totalorder %s17, 0
    %p177 = por %p175, %p176
    %p178 = scmp.le.s32.totalorder 1, %s11
    %p179 = scmp.lt.s32.totalorder %s11, 3
    %p180 = pnand %p178, %p179
    %p181 = pneg %p180
    // Predicated region
    $region9: #{gated_spatial_conv2d.1} parent=5 // pred_check
      _
    $region10: #{gated_spatial_conv2d.1} parent=5 // pred_check_branch
      %183 = sbr.rel (%p180) target = $region12
    $region11: #{gated_spatial_conv2d.1} parent=5 // pred_region
      %s184 = ssub.s32 %s11, 1
      // Predicated region
      $region13: #{gated_spatial_conv2d.1} parent=11 // pred_check
        %p185 = pneg %p100
      $region14: #{gated_spatial_conv2d.1} parent=11 // pred_check_branch
        %187 = sbr.rel (%p185) target = $region16
      $region15: #{gated_spatial_conv2d.1} parent=11 // pred_region
        _
      $region16: #{gated_spatial_conv2d.1} parent=11 // pred_fallthru
        _
      // Predicated region
      $region17: #{gated_spatial_conv2d.1} parent=11 // pred_check
        %p188 = pneg %p121
      $region18: #{gated_spatial_conv2d.1} parent=11 // pred_check_branch
        %190 = sbr.rel (%p188) target = $region20
      $region19: #{gated_spatial_conv2d.1} parent=11 // pred_region
        _
      $region20: #{gated_spatial_conv2d.1} parent=11 // pred_fallthru
        _
      // Predicated region
      $region21: #{gated_spatial_conv2d.1} parent=11 // pred_check
        %p191 = pneg %p142
      $region22: #{gated_spatial_conv2d.1} parent=11 // pred_check_branch
        %193 = sbr.rel (%p191) target = $region24
      $region23: #{gated_spatial_conv2d.1} parent=11 // pred_region
        _
      $region24: #{gated_spatial_conv2d.1} parent=11 // pred_fallthru
        _
    $region12: #{gated_spatial_conv2d.1} parent=5 // pred_fallthru
      _
    %p194 = scmp.lt.s32.totalorder %s11, 2
    // Predicated region
    $region25: #{gated_spatial_conv2d.1} parent=5 // pred_check
      %p195 = pneg %p194
    $region26: #{gated_spatial_conv2d.1} parent=5 // pred_check_branch
      %197 = sbr.rel (%p195) target = $region28
    $region27: #{gated_spatial_conv2d.1} parent=5 // pred_region
      // Predicated region
      $region29: #{gated_spatial_conv2d.1} parent=27 // pred_check
        %p198 = pneg %p45
      $region30: #{gated_spatial_conv2d.1} parent=27 // pred_check_branch
        %200 = sbr.rel (%p198) target = $region32
      $region31: #{gated_spatial_conv2d.1} parent=27 // pred_region
        %s201 = smul.u32 2, %s19
        %p202 = scmp.lt.s32.totalorder %s18, 1
        %s203 = scalar_select %p202, %s18, 1
        %p204 = scmp.lt.s32.totalorder %s201, 1
        %s205 = scalar_select %p204, %s201, 1
        %s206 = smul.addr %s203, 8
        %s207 = sadd.s32 %s205, %s206
        %s208 = smul.addr %s207, 8
        %s209 = scalar_lea.vmem %s0, %s208
        %s210 = smul.u32 2, %s19
      $region32: #{gated_spatial_conv2d.1} parent=27 // pred_fallthru
        _
      // Predicated region
      $region33: #{gated_spatial_conv2d.1} parent=27 // pred_check
        %p211 = pneg %p73
      $region34: #{gated_spatial_conv2d.1} parent=27 // pred_check_branch
        %213 = sbr.rel (%p211) target = $region36
      $region35: #{gated_spatial_conv2d.1} parent=27 // pred_region
        %s214 = smul.u32 2, %s19
        %p215 = scmp.lt.s32.totalorder %s18, 1
        %s216 = scalar_select %p215, %s18, 1
        %p217 = scmp.lt.s32.totalorder %s214, 1
        %s218 = scalar_select %p217, %s214, 1
        %s219 = smul.addr %s216, 2
        %s220 = sadd.s32 %s218, %s219
        %s221 = scalar_lea.vmem %s1, %s220
        %s222 = smul.u32 2, %s19
      $region36: #{gated_spatial_conv2d.1} parent=27 // pred_fallthru
        _
    $region28: #{gated_spatial_conv2d.1} parent=5 // pred_fallthru
      _
    %p223 = scmp.le.s32.totalorder 1, %s11
    %p224 = scmp.lt.s32.totalorder %s11, 3
    %p225 = pnand %p223, %p224
    %p226 = pneg %p225
    // Predicated region
    $region37: #{gated_spatial_conv2d.1} parent=5 // pred_check
      _
    $region38: #{gated_spatial_conv2d.1} parent=5 // pred_check_branch
      %228 = sbr.rel (%p225) target = $region40
    $region39: #{gated_spatial_conv2d.1} parent=5 // pred_region
      %s229 = ssub.s32 %s11, 1
      %s230 = smul.u32 2, %s21
      %p231 = scmp.lt.s32.totalorder %s20, 1
      %s232 = scalar_select %p231, %s20, 1
      %p233 = scmp.lt.s32.totalorder %s230, 1
      %s234 = scalar_select %p233, %s230, 1
      %s235 = smul.addr %s232, 8
      %s236 = sadd.s32 %s234, %s235
      %s237 = smul.addr %s236, 8
      %s238 = scalar_lea.vmem %s0, %s237
      %p239 = pneg %p51
      %p240 = pneg %p48
      %s241 = smul.u32 2, %s21
      %p242 = scmp.lt.s32.totalorder %s20, 1
      %s243 = scalar_select %p242, %s20, 1
      %p244 = scmp.lt.s32.totalorder %s241, 1
      %s245 = scalar_select %p244, %s241, 1
      %s246 = smul.addr %s243, 2
      %s247 = sadd.s32 %s245, %s246
      %s248 = scalar_lea.vmem %s1, %s247
      %p249 = pneg %p79
      %p250 = pneg %p76
      %p251 = pneg %p100
      %p252 = pneg %p97
      %p253 = pneg %p121
      %p254 = pneg %p118
      %p255 = pneg %p142
      %p256 = pneg %p139
      %p257 = pneg %p170
      %p258 = pneg %p167
      %s259 = smul.u32 2, %s21
      %p260 = scmp.lt.s32.totalorder %s20, 1
      %s261 = scalar_select %p260, %s20, 1
      %p262 = scmp.lt.s32.totalorder %s259, 1
      %s263 = scalar_select %p262, %s259, 1
      %s264 = smul.addr %s261, 8
      %s265 = sadd.s32 %s263, %s264
      %s266 = smul.addr %s265, 8
      %s267 = scalar_lea.vmem %s5, %s266
      %s268 = smul.u32 2, %s21
      %p269 = scmp.lt.s32.totalorder %s20, 1
      %s270 = scalar_select %p269, %s20, 1
      %p271 = scmp.lt.s32.totalorder %s268, 1
      %s272 = scalar_select %p271, %s268, 1
      %s273 = smul.addr %s270, 8
      %s274 = sadd.s32 %s272, %s273
      %s275 = smul.addr %s274, 8
      %s276 = scalar_lea.vmem %s0, %s275
      %s277 = smul.u32 2, %s21
      %s278 = smul.u32 2, %s21
      %p279 = scmp.lt.s32.totalorder %s20, 1
      %s280 = scalar_select %p279, %s20, 1
      %p281 = scmp.lt.s32.totalorder %s278, 1
      %s282 = scalar_select %p281, %s278, 1
      %s283 = smul.addr %s280, 2
      %s284 = sadd.s32 %s282, %s283
      %s285 = scalar_lea.vmem %s1, %s284
      %s286 = smul.u32 2, %s21
      %s287 = smul.u32 2, %s21
      %p288 = scmp.lt.s32.totalorder %s20, 1
      %s289 = scalar_select %p288, %s20, 1
      %p290 = scmp.lt.s32.totalorder %s287, 1
      %s291 = scalar_select %p290, %s287, 1
      %s292 = smul.addr %s289, 8
      %s293 = sadd.s32 %s291, %s292
      %s294 = smul.addr %s293, 8
      %s295 = scalar_lea.vmem %s5, %s294
      %s296 = smul.u32 2, %s21
      %v297 = vld [vmem:[%s276] sm:$0xff]
      %v298 = vld [vmem:[%s276 + $0x8] sm:$0xff]
      %v299 = vld [vmem:[%s276 + $0x10] sm:$0xff]
      %v300 = vld [vmem:[%s276 + $0x18] sm:$0xff]
      %v301 = vld [vmem:[%s276 + $0x20] sm:$0xff]
      %v302 = vld [vmem:[%s276 + $0x28] sm:$0xff]
      %v303 = vld [vmem:[%s276 + $0x30] sm:$0xff]
      %v304 = vld [vmem:[%s276 + $0x38] sm:$0xff]
      %v305 = vld [vmem:[%s285] sm:$0x3]
      %v306 = vld [vmem:[%s3] sm:$0xff]
      %v307 = vld [vmem:[%s3 + $0x8] sm:$0xff]
      %v308 = vld [vmem:[%s3 + $0x10] sm:$0xff]
      %v309 = vld [vmem:[%s3 + $0x18] sm:$0xff]
      %v310 = vld [vmem:[%s3 + $0x20] sm:$0x1]
      %v311 = vld [vmem:[%s2] sm:$0xff]
      %v312 = vld [vmem:[%s2 + $0x8] sm:$0xff]
      %v313 = vld [vmem:[%s2 + $0x10] sm:$0xff]
      %v314 = vld [vmem:[%s2 + $0x18] sm:$0xff]
      %v315 = vld [vmem:[%s2 + $0x20] sm:$0x1]
      %317 = vset.pattern.permute.xlu0 0
      %318 = vperm.xlu0 %317, %v306
      %v319 = vpop.permute.xlu0 %318
      %322 = vset.pattern.permute.xlu0 0
      %323 = vperm.xlu0 %322, %v307
      %v324 = vpop.permute.xlu0 %323
      %327 = vset.pattern.permute.xlu0 0
      %328 = vperm.xlu0 %327, %v308
      %v329 = vpop.permute.xlu0 %328
      %332 = vset.pattern.permute.xlu0 0
      %333 = vperm.xlu0 %332, %v309
      %v334 = vpop.permute.xlu0 %333
      %337 = vset.pattern.permute.xlu0 0
      %338 = vperm.xlu0 %337, %v310
      %v339 = vpop.permute.xlu0 %338
      %v342 = vperm.slane %v305, 0
      %v343 = vperm.slane %v305, 1
      %v346 = vmul.f32 %v319, %v342
      %v347 = vmul.f32 %v319, %v343
      %v348 = vmul.f32 %v324, %v342
      %v349 = vmul.f32 %v324, %v343
      %v350 = vmul.f32 %v329, %v342
      %v351 = vmul.f32 %v329, %v343
      %v352 = vmul.f32 %v334, %v342
      %v353 = vmul.f32 %v334, %v343
      %v354 = vmul.f32 %v339, %v342
      %v355 = vmul.f32 %v339, %v343
      %vm356 = vcmask 261120
      %v358 = vsel %vm356, %v311, 0
      %v361 = vsel %vm356, %v312, 0
      %v364 = vsel %vm356, %v313, 0
      %v367 = vsel %vm356, %v314, 0
      %v370 = vsel %vm356, %v315, 0
      %372 = vmatpush.msra.mxu0 0.0
      %373 = vmatpush.msra.mxu0 0.0
      %374 = vmatpush.msra.mxu0 0.0
      %375 = vmatpush.msra.mxu0 0.0
      %376 = vmatpush.msra.mxu0 0.0
      %377 = vmatpush.msra.mxu0 0.0
      %378 = vmatpush.msra.mxu0 0.0
      %379 = vmatpush.msra.mxu0 0.0
      %380 = vmatpush.msra.mxu0 0.0
      %381 = vmatpush.msra.mxu0 0.0
      %382 = vmatpush.msra.mxu0 0.0
      %383 = vmatpush.msra.mxu0 0.0
      %v384 = vand.u32 %v303, 4294901760
      %385 = vmatpush.msra.mxu0 %v384
      %v386 = vand.u32 %v301, 4294901760
      %387 = vmatpush.msra.mxu0 %v386
      %v388 = vand.u32 %v299, 4294901760
      %389 = vmatpush.msra.mxu0 %v388
      %v390 = vand.u32 %v297, 4294901760
      %391 = vmatpush.msra.mxu0 %v390
      %v392 = vand.u32 %v358, 4294901760
      %v393 = vsub.f32 %v358, %v392
      %v394 = vand.u32 %v393, 4294901760
      %v395 = vsub.f32 %v393, %v394
      %v396 = vand.u32 %v395, 4294901760
      %397 = vmatmul.f32.gmra.mxu0 %v396
      %v398 = vpop.f32.mrf.mxu0
      %v399 = vadd.f32 %v346, %v398
      %v400 = vand.u32 %v361, 4294901760
      %v401 = vsub.f32 %v361, %v400
      %v402 = vand.u32 %v401, 4294901760
      %v403 = vsub.f32 %v401, %v402
      %v404 = vand.u32 %v403, 4294901760
      %405 = vmatmul.f32.gmra.mxu0 %v404
      %v406 = vpop.f32.mrf.mxu0
      %v407 = vadd.f32 %v348, %v406
      %v408 = vand.u32 %v364, 4294901760
      %v409 = vsub.f32 %v364, %v408
      %v410 = vand.u32 %v409, 4294901760
      %v411 = vsub.f32 %v409, %v410
      %v412 = vand.u32 %v411, 4294901760
      %413 = vmatmul.f32.gmra.mxu0 %v412
      %v414 = vpop.f32.mrf.mxu0
      %v415 = vadd.f32 %v350, %v414
      %v416 = vand.u32 %v367, 4294901760
      %v417 = vsub.f32 %v367, %v416
      %v418 = vand.u32 %v417, 4294901760
      %v419 = vsub.f32 %v417, %v418
      %v420 = vand.u32 %v419, 4294901760
      %421 = vmatmul.f32.gmra.mxu0 %v420
      %v422 = vpop.f32.mrf.mxu0
      %v423 = vadd.f32 %v352, %v422
      %v424 = vand.u32 %v370, 4294901760
      %v425 = vsub.f32 %v370, %v424
      %v426 = vand.u32 %v425, 4294901760
      %v427 = vsub.f32 %v425, %v426
      %v428 = vand.u32 %v427, 4294901760
      %429 = vmatmul.f32.gmra.mxu0 %v428
      %v430 = vpop.f32.mrf.mxu0
      %v431 = vadd.f32 %v354, %v430
      %432 = vdwg.mxu0
      %433 = vmatpush.msra.mxu0 0.0
      %434 = vmatpush.msra.mxu0 0.0
      %435 = vmatpush.msra.mxu0 0.0
      %436 = vmatpush.msra.mxu0 0.0
      %437 = vmatpush.msra.mxu0 0.0
      %438 = vmatpush.msra.mxu0 0.0
      %439 = vmatpush.msra.mxu0 0.0
      %440 = vmatpush.msra.mxu0 0.0
      %441 = vmatpush.msra.mxu0 0.0
      %442 = vmatpush.msra.mxu0 0.0
      %443 = vmatpush.msra.mxu0 0.0
      %444 = vmatpush.msra.mxu0 0.0
      %v445 = vand.u32 %v303, 4294901760
      %v446 = vsub.f32 %v303, %v445
      %v447 = vand.u32 %v446, 4294901760
      %v448 = vsub.f32 %v446, %v447
      %v449 = vand.u32 %v448, 4294901760
      %450 = vmatpush.msra.mxu0 %v449
      %v451 = vand.u32 %v301, 4294901760
      %v452 = vsub.f32 %v301, %v451
      %v453 = vand.u32 %v452, 4294901760
      %v454 = vsub.f32 %v452, %v453
      %v455 = vand.u32 %v454, 4294901760
      %456 = vmatpush.msra.mxu0 %v455
      %v457 = vand.u32 %v299, 4294901760
      %v458 = vsub.f32 %v299, %v457
      %v459 = vand.u32 %v458, 4294901760
      %v460 = vsub.f32 %v458, %v459
      %v461 = vand.u32 %v460, 4294901760
      %462 = vmatpush.msra.mxu0 %v461
      %v463 = vand.u32 %v297, 4294901760
      %v464 = vsub.f32 %v297, %v463
      %v465 = vand.u32 %v464, 4294901760
      %v466 = vsub.f32 %v464, %v465
      %v467 = vand.u32 %v466, 4294901760
      %468 = vmatpush.msra.mxu0 %v467
      %v469 = vand.u32 %v358, 4294901760
      %470 = vmatmul.f32.gmra.mxu0 %v469
      %v471 = vpop.f32.mrf.mxu0
      %v472 = vadd.f32 %v399, %v471
      %v473 = vand.u32 %v361, 4294901760
      %474 = vmatmul.f32.gmra.mxu0 %v473
      %v475 = vpop.f32.mrf.mxu0
      %v476 = vadd.f32 %v407, %v475
      %v477 = vand.u32 %v364, 4294901760
      %478 = vmatmul.f32.gmra.mxu0 %v477
      %v479 = vpop.f32.mrf.mxu0
      %v480 = vadd.f32 %v415, %v479
      %v481 = vand.u32 %v367, 4294901760
      %482 = vmatmul.f32.gmra.mxu0 %v481
      %v483 = vpop.f32.mrf.mxu0
      %v484 = vadd.f32 %v423, %v483
      %v485 = vand.u32 %v370, 4294901760
      %486 = vmatmul.f32.gmra.mxu0 %v485
      %v487 = vpop.f32.mrf.mxu0
      %v488 = vadd.f32 %v431, %v487
      %489 = vdwg.mxu0
      %490 = vmatpush.msra.mxu0 0.0
      %491 = vmatpush.msra.mxu0 0.0
      %492 = vmatpush.msra.mxu0 0.0
      %493 = vmatpush.msra.mxu0 0.0
      %494 = vmatpush.msra.mxu0 0.0
      %495 = vmatpush.msra.mxu0 0.0
      %496 = vmatpush.msra.mxu0 0.0
      %497 = vmatpush.msra.mxu0 0.0
      %498 = vmatpush.msra.mxu0 0.0
      %499 = vmatpush.msra.mxu0 0.0
      %500 = vmatpush.msra.mxu0 0.0
      %501 = vmatpush.msra.mxu0 0.0
      %v502 = vand.u32 %v303, 4294901760
      %v503 = vsub.f32 %v303, %v502
      %504 = vmatpush.msra.mxu0 %v503
      %v505 = vand.u32 %v301, 4294901760
      %v506 = vsub.f32 %v301, %v505
      %507 = vmatpush.msra.mxu0 %v506
      %v508 = vand.u32 %v299, 4294901760
      %v509 = vsub.f32 %v299, %v508
      %510 = vmatpush.msra.mxu0 %v509
      %v511 = vand.u32 %v297, 4294901760
      %v512 = vsub.f32 %v297, %v511
      %513 = vmatpush.msra.mxu0 %v512
      %v514 = vand.u32 %v358, 4294901760
      %v515 = vsub.f32 %v358, %v514
      %516 = vmatmul.f32.gmra.mxu0 %v515
      %v517 = vpop.f32.mrf.mxu0
      %v518 = vadd.f32 %v472, %v517
      %v519 = vand.u32 %v361, 4294901760
      %v520 = vsub.f32 %v361, %v519
      %521 = vmatmul.f32.gmra.mxu0 %v520
      %v522 = vpop.f32.mrf.mxu0
      %v523 = vadd.f32 %v476, %v522
      %v524 = vand.u32 %v364, 4294901760
      %v525 = vsub.f32 %v364, %v524
      %526 = vmatmul.f32.gmra.mxu0 %v525
      %v527 = vpop.f32.mrf.mxu0
      %v528 = vadd.f32 %v480, %v527
      %v529 = vand.u32 %v367, 4294901760
      %v530 = vsub.f32 %v367, %v529
      %531 = vmatmul.f32.gmra.mxu0 %v530
      %v532 = vpop.f32.mrf.mxu0
      %v533 = vadd.f32 %v484, %v532
      %v534 = vand.u32 %v370, 4294901760
      %v535 = vsub.f32 %v370, %v534
      %536 = vmatmul.f32.gmra.mxu0 %v535
      %v537 = vpop.f32.mrf.mxu0
      %v538 = vadd.f32 %v488, %v537
      %539 = vdwg.mxu0
      %540 = vmatpush.msra.mxu0 0.0
      %541 = vmatpush.msra.mxu0 0.0
      %542 = vmatpush.msra.mxu0 0.0
      %543 = vmatpush.msra.mxu0 0.0
      %544 = vmatpush.msra.mxu0 0.0
      %545 = vmatpush.msra.mxu0 0.0
      %546 = vmatpush.msra.mxu0 0.0
      %547 = vmatpush.msra.mxu0 0.0
      %548 = vmatpush.msra.mxu0 0.0
      %549 = vmatpush.msra.mxu0 0.0
      %550 = vmatpush.msra.mxu0 0.0
      %551 = vmatpush.msra.mxu0 0.0
      %v552 = vand.u32 %v303, 4294901760
      %553 = vmatpush.msra.mxu0 %v552
      %v554 = vand.u32 %v301, 4294901760
      %555 = vmatpush.msra.mxu0 %v554
      %v556 = vand.u32 %v299, 4294901760
      %557 = vmatpush.msra.mxu0 %v556
      %v558 = vand.u32 %v297, 4294901760
      %559 = vmatpush.msra.mxu0 %v558
      %v560 = vand.u32 %v358, 4294901760
      %v561 = vsub.f32 %v358, %v560
      %v562 = vand.u32 %v561, 4294901760
      %563 = vmatmul.f32.gmra.mxu0 %v562
      %v564 = vpop.f32.mrf.mxu0
      %v565 = vadd.f32 %v518, %v564
      %v566 = vand.u32 %v361, 4294901760
      %v567 = vsub.f32 %v361, %v566
      %v568 = vand.u32 %v567, 4294901760
      %569 = vmatmul.f32.gmra.mxu0 %v568
      %v570 = vpop.f32.mrf.mxu0
      %v571 = vadd.f32 %v523, %v570
      %v572 = vand.u32 %v364, 4294901760
      %v573 = vsub.f32 %v364, %v572
      %v574 = vand.u32 %v573, 4294901760
      %575 = vmatmul.f32.gmra.mxu0 %v574
      %v576 = vpop.f32.mrf.mxu0
      %v577 = vadd.f32 %v528, %v576
      %v578 = vand.u32 %v367, 4294901760
      %v579 = vsub.f32 %v367, %v578
      %v580 = vand.u32 %v579, 4294901760
      %581 = vmatmul.f32.gmra.mxu0 %v580
      %v582 = vpop.f32.mrf.mxu0
      %v583 = vadd.f32 %v533, %v582
      %v584 = vand.u32 %v370, 4294901760
      %v585 = vsub.f32 %v370, %v584
      %v586 = vand.u32 %v585, 4294901760
      %587 = vmatmul.f32.gmra.mxu0 %v586
      %v588 = vpop.f32.mrf.mxu0
      %v589 = vadd.f32 %v538, %v588
      %590 = vdwg.mxu0
      %591 = vmatpush.msra.mxu0 0.0
      %592 = vmatpush.msra.mxu0 0.0
      %593 = vmatpush.msra.mxu0 0.0
      %594 = vmatpush.msra.mxu0 0.0
      %595 = vmatpush.msra.mxu0 0.0
      %596 = vmatpush.msra.mxu0 0.0
      %597 = vmatpush.msra.mxu0 0.0
      %598 = vmatpush.msra.mxu0 0.0
      %599 = vmatpush.msra.mxu0 0.0
      %600 = vmatpush.msra.mxu0 0.0
      %601 = vmatpush.msra.mxu0 0.0
      %602 = vmatpush.msra.mxu0 0.0
      %v603 = vand.u32 %v303, 4294901760
      %v604 = vsub.f32 %v303, %v603
      %v605 = vand.u32 %v604, 4294901760
      %606 = vmatpush.msra.mxu0 %v605
      %v607 = vand.u32 %v301, 4294901760
      %v608 = vsub.f32 %v301, %v607
      %v609 = vand.u32 %v608, 4294901760
      %610 = vmatpush.msra.mxu0 %v609
      %v611 = vand.u32 %v299, 4294901760
      %v612 = vsub.f32 %v299, %v611
      %v613 = vand.u32 %v612, 4294901760
      %614 = vmatpush.msra.mxu0 %v613
      %v615 = vand.u32 %v297, 4294901760
      %v616 = vsub.f32 %v297, %v615
      %v617 = vand.u32 %v616, 4294901760
      %618 = vmatpush.msra.mxu0 %v617
      %v619 = vand.u32 %v358, 4294901760
      %620 = vmatmul.f32.gmra.mxu0 %v619
      %v621 = vpop.f32.mrf.mxu0
      %v622 = vadd.f32 %v565, %v621
      %v623 = vand.u32 %v361, 4294901760
      %624 = vmatmul.f32.gmra.mxu0 %v623
      %v625 = vpop.f32.mrf.mxu0
      %v626 = vadd.f32 %v571, %v625
      %v627 = vand.u32 %v364, 4294901760
      %628 = vmatmul.f32.gmra.mxu0 %v627
      %v629 = vpop.f32.mrf.mxu0
      %v630 = vadd.f32 %v577, %v629
      %v631 = vand.u32 %v367, 4294901760
      %632 = vmatmul.f32.gmra.mxu0 %v631
      %v633 = vpop.f32.mrf.mxu0
      %v634 = vadd.f32 %v583, %v633
      %v635 = vand.u32 %v370, 4294901760
      %636 = vmatmul.f32.gmra.mxu0 %v635
      %v637 = vpop.f32.mrf.mxu0
      %v638 = vadd.f32 %v589, %v637
      %639 = vdwg.mxu0
      %640 = vmatpush.msra.mxu0 0.0
      %641 = vmatpush.msra.mxu0 0.0
      %642 = vmatpush.msra.mxu0 0.0
      %643 = vmatpush.msra.mxu0 0.0
      %644 = vmatpush.msra.mxu0 0.0
      %645 = vmatpush.msra.mxu0 0.0
      %646 = vmatpush.msra.mxu0 0.0
      %647 = vmatpush.msra.mxu0 0.0
      %648 = vmatpush.msra.mxu0 0.0
      %649 = vmatpush.msra.mxu0 0.0
      %650 = vmatpush.msra.mxu0 0.0
      %651 = vmatpush.msra.mxu0 0.0
      %v652 = vand.u32 %v303, 4294901760
      %653 = vmatpush.msra.mxu0 %v652
      %v654 = vand.u32 %v301, 4294901760
      %655 = vmatpush.msra.mxu0 %v654
      %v656 = vand.u32 %v299, 4294901760
      %657 = vmatpush.msra.mxu0 %v656
      %v658 = vand.u32 %v297, 4294901760
      %659 = vmatpush.msra.mxu0 %v658
      %v660 = vand.u32 %v358, 4294901760
      %661 = vmatmul.f32.gmra.mxu0 %v660
      %v662 = vpop.f32.mrf.mxu0
      %v663 = vadd.f32 %v622, %v662
      %v664 = vand.u32 %v361, 4294901760
      %665 = vmatmul.f32.gmra.mxu0 %v664
      %v666 = vpop.f32.mrf.mxu0
      %v667 = vadd.f32 %v626, %v666
      %v668 = vand.u32 %v364, 4294901760
      %669 = vmatmul.f32.gmra.mxu0 %v668
      %v670 = vpop.f32.mrf.mxu0
      %v671 = vadd.f32 %v630, %v670
      %v672 = vand.u32 %v367, 4294901760
      %673 = vmatmul.f32.gmra.mxu0 %v672
      %v674 = vpop.f32.mrf.mxu0
      %v675 = vadd.f32 %v634, %v674
      %v676 = vand.u32 %v370, 4294901760
      %677 = vmatmul.f32.gmra.mxu0 %v676
      %v678 = vpop.f32.mrf.mxu0
      %v679 = vadd.f32 %v638, %v678
      %680 = vdwg.mxu0
      %681 = vmatpush.msra.mxu0 0.0
      %682 = vmatpush.msra.mxu0 0.0
      %683 = vmatpush.msra.mxu0 0.0
      %684 = vmatpush.msra.mxu0 0.0
      %685 = vmatpush.msra.mxu0 0.0
      %686 = vmatpush.msra.mxu0 0.0
      %687 = vmatpush.msra.mxu0 0.0
      %688 = vmatpush.msra.mxu0 0.0
      %689 = vmatpush.msra.mxu0 0.0
      %690 = vmatpush.msra.mxu0 0.0
      %691 = vmatpush.msra.mxu0 0.0
      %692 = vmatpush.msra.mxu0 0.0
      %v693 = vand.u32 %v304, 4294901760
      %694 = vmatpush.msra.mxu0 %v693
      %v695 = vand.u32 %v302, 4294901760
      %696 = vmatpush.msra.mxu0 %v695
      %v697 = vand.u32 %v300, 4294901760
      %698 = vmatpush.msra.mxu0 %v697
      %v699 = vand.u32 %v298, 4294901760
      %700 = vmatpush.msra.mxu0 %v699
      %v701 = vand.u32 %v358, 4294901760
      %v702 = vsub.f32 %v358, %v701
      %v703 = vand.u32 %v702, 4294901760
      %v704 = vsub.f32 %v702, %v703
      %v705 = vand.u32 %v704, 4294901760
      %706 = vmatmul.f32.gmra.mxu0 %v705
      %v707 = vpop.f32.mrf.mxu0
      %v708 = vadd.f32 %v347, %v707
      %v709 = vand.u32 %v361, 4294901760
      %v710 = vsub.f32 %v361, %v709
      %v711 = vand.u32 %v710, 4294901760
      %v712 = vsub.f32 %v710, %v711
      %v713 = vand.u32 %v712, 4294901760
      %714 = vmatmul.f32.gmra.mxu0 %v713
      %v715 = vpop.f32.mrf.mxu0
      %v716 = vadd.f32 %v349, %v715
      %v717 = vand.u32 %v364, 4294901760
      %v718 = vsub.f32 %v364, %v717
      %v719 = vand.u32 %v718, 4294901760
      %v720 = vsub.f32 %v718, %v719
      %v721 = vand.u32 %v720, 4294901760
      %722 = vmatmul.f32.gmra.mxu0 %v721
      %v723 = vpop.f32.mrf.mxu0
      %v724 = vadd.f32 %v351, %v723
      %v725 = vand.u32 %v367, 4294901760
      %v726 = vsub.f32 %v367, %v725
      %v727 = vand.u32 %v726, 4294901760
      %v728 = vsub.f32 %v726, %v727
      %v729 = vand.u32 %v728, 4294901760
      %730 = vmatmul.f32.gmra.mxu0 %v729
      %v731 = vpop.f32.mrf.mxu0
      %v732 = vadd.f32 %v353, %v731
      %v733 = vand.u32 %v370, 4294901760
      %v734 = vsub.f32 %v370, %v733
      %v735 = vand.u32 %v734, 4294901760
      %v736 = vsub.f32 %v734, %v735
      %v737 = vand.u32 %v736, 4294901760
      %738 = vmatmul.f32.gmra.mxu0 %v737
      %v739 = vpop.f32.mrf.mxu0
      %v740 = vadd.f32 %v355, %v739
      %741 = vdwg.mxu0
      %742 = vmatpush.msra.mxu0 0.0
      %743 = vmatpush.msra.mxu0 0.0
      %744 = vmatpush.msra.mxu0 0.0
      %745 = vmatpush.msra.mxu0 0.0
      %746 = vmatpush.msra.mxu0 0.0
      %747 = vmatpush.msra.mxu0 0.0
      %748 = vmatpush.msra.mxu0 0.0
      %749 = vmatpush.msra.mxu0 0.0
      %750 = vmatpush.msra.mxu0 0.0
      %751 = vmatpush.msra.mxu0 0.0
      %752 = vmatpush.msra.mxu0 0.0
      %753 = vmatpush.msra.mxu0 0.0
      %v754 = vand.u32 %v304, 4294901760
      %v755 = vsub.f32 %v304, %v754
      %v756 = vand.u32 %v755, 4294901760
      %v757 = vsub.f32 %v755, %v756
      %v758 = vand.u32 %v757, 4294901760
      %759 = vmatpush.msra.mxu0 %v758
      %v760 = vand.u32 %v302, 4294901760
      %v761 = vsub.f32 %v302, %v760
      %v762 = vand.u32 %v761, 4294901760
      %v763 = vsub.f32 %v761, %v762
      %v764 = vand.u32 %v763, 4294901760
      %765 = vmatpush.msra.mxu0 %v764
      %v766 = vand.u32 %v300, 4294901760
      %v767 = vsub.f32 %v300, %v766
      %v768 = vand.u32 %v767, 4294901760
      %v769 = vsub.f32 %v767, %v768
      %v770 = vand.u32 %v769, 4294901760
      %771 = vmatpush.msra.mxu0 %v770
      %v772 = vand.u32 %v298, 4294901760
      %v773 = vsub.f32 %v298, %v772
      %v774 = vand.u32 %v773, 4294901760
      %v775 = vsub.f32 %v773, %v774
      %v776 = vand.u32 %v775, 4294901760
      %777 = vmatpush.msra.mxu0 %v776
      %v778 = vand.u32 %v358, 4294901760
      %779 = vmatmul.f32.gmra.mxu0 %v778
      %v780 = vpop.f32.mrf.mxu0
      %v781 = vadd.f32 %v708, %v780
      %v782 = vand.u32 %v361, 4294901760
      %783 = vmatmul.f32.gmra.mxu0 %v782
      %v784 = vpop.f32.mrf.mxu0
      %v785 = vadd.f32 %v716, %v784
      %v786 = vand.u32 %v364, 4294901760
      %787 = vmatmul.f32.gmra.mxu0 %v786
      %v788 = vpop.f32.mrf.mxu0
      %v789 = vadd.f32 %v724, %v788
      %v790 = vand.u32 %v367, 4294901760
      %791 = vmatmul.f32.gmra.mxu0 %v790
      %v792 = vpop.f32.mrf.mxu0
      %v793 = vadd.f32 %v732, %v792
      %v794 = vand.u32 %v370, 4294901760
      %795 = vmatmul.f32.gmra.mxu0 %v794
      %v796 = vpop.f32.mrf.mxu0
      %v797 = vadd.f32 %v740, %v796
      %798 = vdwg.mxu0
      %799 = vmatpush.msra.mxu0 0.0
      %800 = vmatpush.msra.mxu0 0.0
      %801 = vmatpush.msra.mxu0 0.0
      %802 = vmatpush.msra.mxu0 0.0
      %803 = vmatpush.msra.mxu0 0.0
      %804 = vmatpush.msra.mxu0 0.0
      %805 = vmatpush.msra.mxu0 0.0
      %806 = vmatpush.msra.mxu0 0.0
      %807 = vmatpush.msra.mxu0 0.0
      %808 = vmatpush.msra.mxu0 0.0
      %809 = vmatpush.msra.mxu0 0.0
      %810 = vmatpush.msra.mxu0 0.0
      %v811 = vand.u32 %v304, 4294901760
      %v812 = vsub.f32 %v304, %v811
      %813 = vmatpush.msra.mxu0 %v812
      %v814 = vand.u32 %v302, 4294901760
      %v815 = vsub.f32 %v302, %v814
      %816 = vmatpush.msra.mxu0 %v815
      %v817 = vand.u32 %v300, 4294901760
      %v818 = vsub.f32 %v300, %v817
      %819 = vmatpush.msra.mxu0 %v818
      %v820 = vand.u32 %v298, 4294901760
      %v821 = vsub.f32 %v298, %v820
      %822 = vmatpush.msra.mxu0 %v821
      %v823 = vand.u32 %v358, 4294901760
      %v824 = vsub.f32 %v358, %v823
      %825 = vmatmul.f32.gmra.mxu0 %v824
      %v826 = vpop.f32.mrf.mxu0
      %v827 = vadd.f32 %v781, %v826
      %v828 = vand.u32 %v361, 4294901760
      %v829 = vsub.f32 %v361, %v828
      %830 = vmatmul.f32.gmra.mxu0 %v829
      %v831 = vpop.f32.mrf.mxu0
      %v832 = vadd.f32 %v785, %v831
      %v833 = vand.u32 %v364, 4294901760
      %v834 = vsub.f32 %v364, %v833
      %835 = vmatmul.f32.gmra.mxu0 %v834
      %v836 = vpop.f32.mrf.mxu0
      %v837 = vadd.f32 %v789, %v836
      %v838 = vand.u32 %v367, 4294901760
      %v839 = vsub.f32 %v367, %v838
      %840 = vmatmul.f32.gmra.mxu0 %v839
      %v841 = vpop.f32.mrf.mxu0
      %v842 = vadd.f32 %v793, %v841
      %v843 = vand.u32 %v370, 4294901760
      %v844 = vsub.f32 %v370, %v843
      %845 = vmatmul.f32.gmra.mxu0 %v844
      %v846 = vpop.f32.mrf.mxu0
      %v847 = vadd.f32 %v797, %v846
      %848 = vdwg.mxu0
      %849 = vmatpush.msra.mxu0 0.0
      %850 = vmatpush.msra.mxu0 0.0
      %851 = vmatpush.msra.mxu0 0.0
      %852 = vmatpush.msra.mxu0 0.0
      %853 = vmatpush.msra.mxu0 0.0
      %854 = vmatpush.msra.mxu0 0.0
      %855 = vmatpush.msra.mxu0 0.0
      %856 = vmatpush.msra.mxu0 0.0
      %857 = vmatpush.msra.mxu0 0.0
      %858 = vmatpush.msra.mxu0 0.0
      %859 = vmatpush.msra.mxu0 0.0
      %860 = vmatpush.msra.mxu0 0.0
      %v861 = vand.u32 %v304, 4294901760
      %862 = vmatpush.msra.mxu0 %v861
      %v863 = vand.u32 %v302, 4294901760
      %864 = vmatpush.msra.mxu0 %v863
      %v865 = vand.u32 %v300, 4294901760
      %866 = vmatpush.msra.mxu0 %v865
      %v867 = vand.u32 %v298, 4294901760
      %868 = vmatpush.msra.mxu0 %v867
      %v869 = vand.u32 %v358, 4294901760
      %v870 = vsub.f32 %v358, %v869
      %v871 = vand.u32 %v870, 4294901760
      %872 = vmatmul.f32.gmra.mxu0 %v871
      %v873 = vpop.f32.mrf.mxu0
      %v874 = vadd.f32 %v827, %v873
      %v875 = vand.u32 %v361, 4294901760
      %v876 = vsub.f32 %v361, %v875
      %v877 = vand.u32 %v876, 4294901760
      %878 = vmatmul.f32.gmra.mxu0 %v877
      %v879 = vpop.f32.mrf.mxu0
      %v880 = vadd.f32 %v832, %v879
      %v881 = vand.u32 %v364, 4294901760
      %v882 = vsub.f32 %v364, %v881
      %v883 = vand.u32 %v882, 4294901760
      %884 = vmatmul.f32.gmra.mxu0 %v883
      %v885 = vpop.f32.mrf.mxu0
      %v886 = vadd.f32 %v837, %v885
      %v887 = vand.u32 %v367, 4294901760
      %v888 = vsub.f32 %v367, %v887
      %v889 = vand.u32 %v888, 4294901760
      %890 = vmatmul.f32.gmra.mxu0 %v889
      %v891 = vpop.f32.mrf.mxu0
      %v892 = vadd.f32 %v842, %v891
      %v893 = vand.u32 %v370, 4294901760
      %v894 = vsub.f32 %v370, %v893
      %v895 = vand.u32 %v894, 4294901760
      %896 = vmatmul.f32.gmra.mxu0 %v895
      %v897 = vpop.f32.mrf.mxu0
      %v898 = vadd.f32 %v847, %v897
      %899 = vdwg.mxu0
      %900 = vmatpush.msra.mxu0 0.0
      %901 = vmatpush.msra.mxu0 0.0
      %902 = vmatpush.msra.mxu0 0.0
      %903 = vmatpush.msra.mxu0 0.0
      %904 = vmatpush.msra.mxu0 0.0
      %905 = vmatpush.msra.mxu0 0.0
      %906 = vmatpush.msra.mxu0 0.0
      %907 = vmatpush.msra.mxu0 0.0
      %908 = vmatpush.msra.mxu0 0.0
      %909 = vmatpush.msra.mxu0 0.0
      %910 = vmatpush.msra.mxu0 0.0
      %911 = vmatpush.msra.mxu0 0.0
      %v912 = vand.u32 %v304, 4294901760
      %v913 = vsub.f32 %v304, %v912
      %v914 = vand.u32 %v913, 4294901760
      %915 = vmatpush.msra.mxu0 %v914
      %v916 = vand.u32 %v302, 4294901760
      %v917 = vsub.f32 %v302, %v916
      %v918 = vand.u32 %v917, 4294901760
      %919 = vmatpush.msra.mxu0 %v918
      %v920 = vand.u32 %v300, 4294901760
      %v921 = vsub.f32 %v300, %v920
      %v922 = vand.u32 %v921, 4294901760
      %923 = vmatpush.msra.mxu0 %v922
      %v924 = vand.u32 %v298, 4294901760
      %v925 = vsub.f32 %v298, %v924
      %v926 = vand.u32 %v925, 4294901760
      %927 = vmatpush.msra.mxu0 %v926
      %v928 = vand.u32 %v358, 4294901760
      %929 = vmatmul.f32.gmra.mxu0 %v928
      %v930 = vpop.f32.mrf.mxu0
      %v931 = vadd.f32 %v874, %v930
      %v932 = vand.u32 %v361, 4294901760
      %933 = vmatmul.f32.gmra.mxu0 %v932
      %v934 = vpop.f32.mrf.mxu0
      %v935 = vadd.f32 %v880, %v934
      %v936 = vand.u32 %v364, 4294901760
      %937 = vmatmul.f32.gmra.mxu0 %v936
      %v938 = vpop.f32.mrf.mxu0
      %v939 = vadd.f32 %v886, %v938
      %v940 = vand.u32 %v367, 4294901760
      %941 = vmatmul.f32.gmra.mxu0 %v940
      %v942 = vpop.f32.mrf.mxu0
      %v943 = vadd.f32 %v892, %v942
      %v944 = vand.u32 %v370, 4294901760
      %945 = vmatmul.f32.gmra.mxu0 %v944
      %v946 = vpop.f32.mrf.mxu0
      %v947 = vadd.f32 %v898, %v946
      %948 = vdwg.mxu0
      %949 = vmatpush.msra.mxu0 0.0
      %950 = vmatpush.msra.mxu0 0.0
      %951 = vmatpush.msra.mxu0 0.0
      %952 = vmatpush.msra.mxu0 0.0
      %953 = vmatpush.msra.mxu0 0.0
      %954 = vmatpush.msra.mxu0 0.0
      %955 = vmatpush.msra.mxu0 0.0
      %956 = vmatpush.msra.mxu0 0.0
      %957 = vmatpush.msra.mxu0 0.0
      %958 = vmatpush.msra.mxu0 0.0
      %959 = vmatpush.msra.mxu0 0.0
      %960 = vmatpush.msra.mxu0 0.0
      %v961 = vand.u32 %v304, 4294901760
      %962 = vmatpush.msra.mxu0 %v961
      %v963 = vand.u32 %v302, 4294901760
      %964 = vmatpush.msra.mxu0 %v963
      %v965 = vand.u32 %v300, 4294901760
      %966 = vmatpush.msra.mxu0 %v965
      %v967 = vand.u32 %v298, 4294901760
      %968 = vmatpush.msra.mxu0 %v967
      %v969 = vand.u32 %v358, 4294901760
      %970 = vmatmul.f32.gmra.mxu0 %v969
      %v971 = vpop.f32.mrf.mxu0
      %v972 = vadd.f32 %v931, %v971
      %v973 = vand.u32 %v361, 4294901760
      %974 = vmatmul.f32.gmra.mxu0 %v973
      %v975 = vpop.f32.mrf.mxu0
      %v976 = vadd.f32 %v935, %v975
      %v977 = vand.u32 %v364, 4294901760
      %978 = vmatmul.f32.gmra.mxu0 %v977
      %v979 = vpop.f32.mrf.mxu0
      %v980 = vadd.f32 %v939, %v979
      %v981 = vand.u32 %v367, 4294901760
      %982 = vmatmul.f32.gmra.mxu0 %v981
      %v983 = vpop.f32.mrf.mxu0
      %v984 = vadd.f32 %v943, %v983
      %v985 = vand.u32 %v370, 4294901760
      %986 = vmatmul.f32.gmra.mxu0 %v985
      %v987 = vpop.f32.mrf.mxu0
      %v988 = vadd.f32 %v947, %v987
      %989 = vdwg.mxu0
      %990 = vset.pattern.permute.xlu0 1
      %991 = vperm.xlu0 %990, %v306
      %v992 = vpop.permute.xlu0 %991
      %994 = vset.pattern.permute.xlu0 1
      %995 = vperm.xlu0 %994, %v307
      %v996 = vpop.permute.xlu0 %995
      %998 = vset.pattern.permute.xlu0 1
      %999 = vperm.xlu0 %998, %v308
      %v1000 = vpop.permute.xlu0 %999
      %1002 = vset.pattern.permute.xlu0 1
      %1003 = vperm.xlu0 %1002, %v309
      %v1004 = vpop.permute.xlu0 %1003
      %1006 = vset.pattern.permute.xlu0 1
      %1007 = vperm.xlu0 %1006, %v310
      %v1008 = vpop.permute.xlu0 %1007
      %v1010 = vadd.f32 %v663, %v992
      %v1011 = vadd.f32 %v972, %v992
      %v1012 = vadd.f32 %v667, %v996
      %v1013 = vadd.f32 %v976, %v996
      %v1014 = vadd.f32 %v671, %v1000
      %v1015 = vadd.f32 %v980, %v1000
      %v1016 = vadd.f32 %v675, %v1004
      %v1017 = vadd.f32 %v984, %v1004
      %v1018 = vadd.f32 %v679, %v1008
      %v1019 = vadd.f32 %v988, %v1008
      %v1020 = vmax.f32 %v1010, 0.0
      %v1021 = vmax.f32 %v1011, 0.0
      %v1022 = vmax.f32 %v1012, 0.0
      %v1023 = vmax.f32 %v1013, 0.0
      %v1024 = vmax.f32 %v1014, 0.0
      %v1025 = vmax.f32 %v1015, 0.0
      %v1026 = vmax.f32 %v1016, 0.0
      %v1027 = vmax.f32 %v1017, 0.0
      %v1028 = vmax.f32 %v1018, 0.0
      %v1029 = vmax.f32 %v1019, 0.0
      %1030 = vset.pattern.permute.xlu0 2
      %1031 = vperm.xlu0 %1030, %v306
      %v1032 = vpop.permute.xlu0 %1031
      %1034 = vset.pattern.permute.xlu0 2
      %1035 = vperm.xlu0 %1034, %v307
      %v1036 = vpop.permute.xlu0 %1035
      %1038 = vset.pattern.permute.xlu0 2
      %1039 = vperm.xlu0 %1038, %v308
      %v1040 = vpop.permute.xlu0 %1039
      %1042 = vset.pattern.permute.xlu0 2
      %1043 = vperm.xlu0 %1042, %v309
      %v1044 = vpop.permute.xlu0 %1043
      %1046 = vset.pattern.permute.xlu0 2
      %1047 = vperm.xlu0 %1046, %v310
      %v1048 = vpop.permute.xlu0 %1047
      %v1050 = vmul.f32 %v1020, %v1032
      %v1051 = vmul.f32 %v1021, %v1032
      %v1052 = vmul.f32 %v1022, %v1036
      %v1053 = vmul.f32 %v1023, %v1036
      %v1054 = vmul.f32 %v1024, %v1040
      %v1055 = vmul.f32 %v1025, %v1040
      %v1056 = vmul.f32 %v1026, %v1044
      %v1057 = vmul.f32 %v1027, %v1044
      %v1058 = vmul.f32 %v1028, %v1048
      %v1059 = vmul.f32 %v1029, %v1048
      %v1060 = vadd.f32 %v1050, %v1052
      %v1061 = vadd.f32 %v1060, %v1054
      %v1062 = vadd.f32 %v1061, %v1056
      %vm1063 = vcmask 1040384
      %v1064 = vsel %vm1063, %v1058, 0.0
      %v1065 = vadd.f32 %v1062, %v1064
      %v1066 = vrot.slane %v1065, 4
      %v1067 = vadd.f32 %v1065, %v1066
      %v1068 = vrot.slane %v1067, 2
      %v1069 = vadd.f32 %v1067, %v1068
      %v1070 = vrot.slane %v1069, 1
      %v1071 = vadd.f32 %v1069, %v1070
      %v1072 = vadd.f32 %v1051, %v1053
      %v1073 = vadd.f32 %v1072, %v1055
      %v1074 = vadd.f32 %v1073, %v1057
      %v1075 = vsel %vm1063, %v1059, 0.0
      %v1076 = vadd.f32 %v1074, %v1075
      %v1077 = vrot.slane %v1076, 4
      %v1078 = vadd.f32 %v1076, %v1077
      %v1079 = vrot.slane %v1078, 2
      %v1080 = vadd.f32 %v1078, %v1079
      %v1081 = vrot.slane %v1080, 1
      %v1082 = vadd.f32 %v1080, %v1081
      %1083 = vset.pattern.permute.xlu0 4
      %1084 = vperm.xlu0 %1083, %v306
      %v1085 = vpop.permute.xlu0 %1084
      %v1087 = vadd.f32 %v1071, %v1085
      %v1088 = vadd.f32 %v1082, %v1085
      %v1089 = vxor.u32 %v1087, 2147483648
      %v1090 = vxor.u32 %v1088, 2147483648
      %v1091 = vmul.f32 %v1089, 1.442695
      %v1092 = vpow.pop %v1091
      %v1093 = vmul.f32 %v1090, 1.442695
      %v1094 = vpow.pop %v1093
      %v1095 = vadd.f32 %v1092, 1.0
      %v1096 = vadd.f32 %v1094, 1.0
      %v1097 = vrcp.pop %v1095
      %v1098 = vmul.f32 %v1095, %v1097
      %v1099 = vsub.f32 1.0, %v1098
      %v1100 = vmul.f32 %v1097, %v1099
      %v1101 = vadd.f32 %v1097, %v1100
      %vm1102 = vweird.f32 %v1095
      %vm1103 = vweird.f32 %v1097
      %vm1104 = vmor %vm1102, %vm1103
      %v1105 = vsel %vm1104, %v1097, %v1101
      %v1106 = vand.u32 2147483647, %v1095
      %vm1107 = vcmp.eq.f32.partialorder %v1106, 8.507059e+37
      %v1108 = vand.u32 %v1095, 2147483648
      %v1109 = vor.u32 1.1754944e-38, %v1108
      %v1110 = vsel %vm1107, %v1109, %v1105
      %v1111 = vmul.f32 1.0, %v1110
      %v1112 = vrcp.pop %v1096
      %v1113 = vmul.f32 %v1096, %v1112
      %v1114 = vsub.f32 1.0, %v1113
      %v1115 = vmul.f32 %v1112, %v1114
      %v1116 = vadd.f32 %v1112, %v1115
      %vm1117 = vweird.f32 %v1096
      %vm1118 = vweird.f32 %v1112
      %vm1119 = vmor %vm1117, %vm1118
      %v1120 = vsel %vm1119, %v1112, %v1116
      %v1121 = vand.u32 2147483647, %v1096
      %vm1122 = vcmp.eq.f32.partialorder %v1121, 8.507059e+37
      %v1123 = vand.u32 %v1096, 2147483648
      %v1124 = vor.u32 1.1754944e-38, %v1123
      %v1125 = vsel %vm1122, %v1124, %v1120
      %v1126 = vmul.f32 1.0, %v1125
      %v1127 = vadd.f32 %v1111, 1.0
      %v1128 = vadd.f32 %v1126, 1.0
      %v1129 = vperm.slane %v1127, 0
      %v1130 = vperm.slane %v1128, 0
      %v1131 = vmul.f32 %v297, %v1129
      %v1132 = vmul.f32 %v298, %v1130
      %v1133 = vmul.f32 %v299, %v1129
      %v1134 = vmul.f32 %v300, %v1130
      %v1135 = vmul.f32 %v301, %v1129
      %v1136 = vmul.f32 %v302, %v1130
      %v1137 = vmul.f32 %v303, %v1129
      %v1138 = vmul.f32 %v304, %v1130
      %v1139 = vld [vmem:[%s4] sm:$0xff]
      %v1140 = vld [vmem:[%s4 + $0x8] sm:$0xff]
      %v1141 = vld [vmem:[%s4 + $0x10] sm:$0xff]
      %v1142 = vld [vmem:[%s4 + $0x18] sm:$0xff]
      %1143 = vset.pattern.permute.xlu0 3
      %1144 = vperm.xlu0 %1143, %v306
      %v1145 = vpop.permute.xlu0 %1144
      %1147 = vset.pattern.permute.xlu0 3
      %1148 = vperm.xlu0 %1147, %v307
      %v1149 = vpop.permute.xlu0 %1148
      %1151 = vset.pattern.permute.xlu0 3
      %1152 = vperm.xlu0 %1151, %v308
      %v1153 = vpop.permute.xlu0 %1152
      %1155 = vset.pattern.permute.xlu0 3
      %1156 = vperm.xlu0 %1155, %v309
      %v1157 = vpop.permute.xlu0 %1156
      %v1160 = vsel %vm356, %v1139, 0
      %v1163 = vsel %vm356, %v1140, 0
      %v1166 = vsel %vm356, %v1141, 0
      %v1169 = vsel %vm356, %v1142, 0
      %1171 = vmatpush.msra.mxu0 0.0
      %1172 = vmatpush.msra.mxu0 0.0
      %1173 = vmatpush.msra.mxu0 0.0
      %1174 = vmatpush.msra.mxu0 0.0
      %1175 = vmatpush.msra.mxu0 0.0
      %1176 = vmatpush.msra.mxu0 0.0
      %1177 = vmatpush.msra.mxu0 0.0
      %1178 = vmatpush.msra.mxu0 0.0
      %1179 = vmatpush.msra.mxu0 0.0
      %1180 = vmatpush.msra.mxu0 0.0
      %1181 = vmatpush.msra.mxu0 0.0
      %1182 = vmatpush.msra.mxu0 0.0
      %v1183 = vand.u32 %v1137, 4294901760
      %1184 = vmatpush.msra.mxu0 %v1183
      %v1185 = vand.u32 %v1135, 4294901760
      %1186 = vmatpush.msra.mxu0 %v1185
      %v1187 = vand.u32 %v1133, 4294901760
      %1188 = vmatpush.msra.mxu0 %v1187
      %v1189 = vand.u32 %v1131, 4294901760
      %1190 = vmatpush.msra.mxu0 %v1189
      %v1191 = vand.u32 %v1160, 4294901760
      %v1192 = vsub.f32 %v1160, %v1191
      %v1193 = vand.u32 %v1192, 4294901760
      %v1194 = vsub.f32 %v1192, %v1193
      %v1195 = vand.u32 %v1194, 4294901760
      %1196 = vmatmul.f32.gmra.mxu0 %v1195
      %v1197 = vpop.f32.mrf.mxu0
      %v1198 = vadd.f32 %v1145, %v1197
      %v1199 = vand.u32 %v1163, 4294901760
      %v1200 = vsub.f32 %v1163, %v1199
      %v1201 = vand.u32 %v1200, 4294901760
      %v1202 = vsub.f32 %v1200, %v1201
      %v1203 = vand.u32 %v1202, 4294901760
      %1204 = vmatmul.f32.gmra.mxu0 %v1203
      %v1205 = vpop.f32.mrf.mxu0
      %v1206 = vadd.f32 %v1149, %v1205
      %v1207 = vand.u32 %v1166, 4294901760
      %v1208 = vsub.f32 %v1166, %v1207
      %v1209 = vand.u32 %v1208, 4294901760
      %v1210 = vsub.f32 %v1208, %v1209
      %v1211 = vand.u32 %v1210, 4294901760
      %1212 = vmatmul.f32.gmra.mxu0 %v1211
      %v1213 = vpop.f32.mrf.mxu0
      %v1214 = vadd.f32 %v1153, %v1213
      %v1215 = vand.u32 %v1169, 4294901760
      %v1216 = vsub.f32 %v1169, %v1215
      %v1217 = vand.u32 %v1216, 4294901760
      %v1218 = vsub.f32 %v1216, %v1217
      %v1219 = vand.u32 %v1218, 4294901760
      %1220 = vmatmul.f32.gmra.mxu0 %v1219
      %v1221 = vpop.f32.mrf.mxu0
      %v1222 = vadd.f32 %v1157, %v1221
      %1223 = vdwg.mxu0
      %1224 = vmatpush.msra.mxu0 0.0
      %1225 = vmatpush.msra.mxu0 0.0
      %1226 = vmatpush.msra.mxu0 0.0
      %1227 = vmatpush.msra.mxu0 0.0
      %1228 = vmatpush.msra.mxu0 0.0
      %1229 = vmatpush.msra.mxu0 0.0
      %1230 = vmatpush.msra.mxu0 0.0
      %1231 = vmatpush.msra.mxu0 0.0
      %1232 = vmatpush.msra.mxu0 0.0
      %1233 = vmatpush.msra.mxu0 0.0
      %1234 = vmatpush.msra.mxu0 0.0
      %1235 = vmatpush.msra.mxu0 0.0
      %v1236 = vand.u32 %v1137, 4294901760
      %v1237 = vsub.f32 %v1137, %v1236
      %v1238 = vand.u32 %v1237, 4294901760
      %v1239 = vsub.f32 %v1237, %v1238
      %v1240 = vand.u32 %v1239, 4294901760
      %1241 = vmatpush.msra.mxu0 %v1240
      %v1242 = vand.u32 %v1135, 4294901760
      %v1243 = vsub.f32 %v1135, %v1242
      %v1244 = vand.u32 %v1243, 4294901760
      %v1245 = vsub.f32 %v1243, %v1244
      %v1246 = vand.u32 %v1245, 4294901760
      %1247 = vmatpush.msra.mxu0 %v1246
      %v1248 = vand.u32 %v1133, 4294901760
      %v1249 = vsub.f32 %v1133, %v1248
      %v1250 = vand.u32 %v1249, 4294901760
      %v1251 = vsub.f32 %v1249, %v1250
      %v1252 = vand.u32 %v1251, 4294901760
      %1253 = vmatpush.msra.mxu0 %v1252
      %v1254 = vand.u32 %v1131, 4294901760
      %v1255 = vsub.f32 %v1131, %v1254
      %v1256 = vand.u32 %v1255, 4294901760
      %v1257 = vsub.f32 %v1255, %v1256
      %v1258 = vand.u32 %v1257, 4294901760
      %1259 = vmatpush.msra.mxu0 %v1258
      %v1260 = vand.u32 %v1160, 4294901760
      %1261 = vmatmul.f32.gmra.mxu0 %v1260
      %v1262 = vpop.f32.mrf.mxu0
      %v1263 = vadd.f32 %v1198, %v1262
      %v1264 = vand.u32 %v1163, 4294901760
      %1265 = vmatmul.f32.gmra.mxu0 %v1264
      %v1266 = vpop.f32.mrf.mxu0
      %v1267 = vadd.f32 %v1206, %v1266
      %v1268 = vand.u32 %v1166, 4294901760
      %1269 = vmatmul.f32.gmra.mxu0 %v1268
      %v1270 = vpop.f32.mrf.mxu0
      %v1271 = vadd.f32 %v1214, %v1270
      %v1272 = vand.u32 %v1169, 4294901760
      %1273 = vmatmul.f32.gmra.mxu0 %v1272
      %v1274 = vpop.f32.mrf.mxu0
      %v1275 = vadd.f32 %v1222, %v1274
      %1276 = vdwg.mxu0
      %1277 = vmatpush.msra.mxu0 0.0
      %1278 = vmatpush.msra.mxu0 0.0
      %1279 = vmatpush.msra.mxu0 0.0
      %1280 = vmatpush.msra.mxu0 0.0
      %1281 = vmatpush.msra.mxu0 0.0
      %1282 = vmatpush.msra.mxu0 0.0
      %1283 = vmatpush.msra.mxu0 0.0
      %1284 = vmatpush.msra.mxu0 0.0
      %1285 = vmatpush.msra.mxu0 0.0
      %1286 = vmatpush.msra.mxu0 0.0
      %1287 = vmatpush.msra.mxu0 0.0
      %1288 = vmatpush.msra.mxu0 0.0
      %v1289 = vand.u32 %v1137, 4294901760
      %v1290 = vsub.f32 %v1137, %v1289
      %1291 = vmatpush.msra.mxu0 %v1290
      %v1292 = vand.u32 %v1135, 4294901760
      %v1293 = vsub.f32 %v1135, %v1292
      %1294 = vmatpush.msra.mxu0 %v1293
      %v1295 = vand.u32 %v1133, 4294901760
      %v1296 = vsub.f32 %v1133, %v1295
      %1297 = vmatpush.msra.mxu0 %v1296
      %v1298 = vand.u32 %v1131, 4294901760
      %v1299 = vsub.f32 %v1131, %v1298
      %1300 = vmatpush.msra.mxu0 %v1299
      %v1301 = vand.u32 %v1160, 4294901760
      %v1302 = vsub.f32 %v1160, %v1301
      %1303 = vmatmul.f32.gmra.mxu0 %v1302
      %v1304 = vpop.f32.mrf.mxu0
      %v1305 = vadd.f32 %v1263, %v1304
      %v1306 = vand.u32 %v1163, 4294901760
      %v1307 = vsub.f32 %v1163, %v1306
      %1308 = vmatmul.f32.gmra.mxu0 %v1307
      %v1309 = vpop.f32.mrf.mxu0
      %v1310 = vadd.f32 %v1267, %v1309
      %v1311 = vand.u32 %v1166, 4294901760
      %v1312 = vsub.f32 %v1166, %v1311
      %1313 = vmatmul.f32.gmra.mxu0 %v1312
      %v1314 = vpop.f32.mrf.mxu0
      %v1315 = vadd.f32 %v1271, %v1314
      %v1316 = vand.u32 %v1169, 4294901760
      %v1317 = vsub.f32 %v1169, %v1316
      %1318 = vmatmul.f32.gmra.mxu0 %v1317
      %v1319 = vpop.f32.mrf.mxu0
      %v1320 = vadd.f32 %v1275, %v1319
      %1321 = vdwg.mxu0
      %1322 = vmatpush.msra.mxu0 0.0
      %1323 = vmatpush.msra.mxu0 0.0
      %1324 = vmatpush.msra.mxu0 0.0
      %1325 = vmatpush.msra.mxu0 0.0
      %1326 = vmatpush.msra.mxu0 0.0
      %1327 = vmatpush.msra.mxu0 0.0
      %1328 = vmatpush.msra.mxu0 0.0
      %1329 = vmatpush.msra.mxu0 0.0
      %1330 = vmatpush.msra.mxu0 0.0
      %1331 = vmatpush.msra.mxu0 0.0
      %1332 = vmatpush.msra.mxu0 0.0
      %1333 = vmatpush.msra.mxu0 0.0
      %v1334 = vand.u32 %v1137, 4294901760
      %1335 = vmatpush.msra.mxu0 %v1334
      %v1336 = vand.u32 %v1135, 4294901760
      %1337 = vmatpush.msra.mxu0 %v1336
      %v1338 = vand.u32 %v1133, 4294901760
      %1339 = vmatpush.msra.mxu0 %v1338
      %v1340 = vand.u32 %v1131, 4294901760
      %1341 = vmatpush.msra.mxu0 %v1340
      %v1342 = vand.u32 %v1160, 4294901760
      %v1343 = vsub.f32 %v1160, %v1342
      %v1344 = vand.u32 %v1343, 4294901760
      %1345 = vmatmul.f32.gmra.mxu0 %v1344
      %v1346 = vpop.f32.mrf.mxu0
      %v1347 = vadd.f32 %v1305, %v1346
      %v1348 = vand.u32 %v1163, 4294901760
      %v1349 = vsub.f32 %v1163, %v1348
      %v1350 = vand.u32 %v1349, 4294901760
      %1351 = vmatmul.f32.gmra.mxu0 %v1350
      %v1352 = vpop.f32.mrf.mxu0
      %v1353 = vadd.f32 %v1310, %v1352
      %v1354 = vand.u32 %v1166, 4294901760
      %v1355 = vsub.f32 %v1166, %v1354
      %v1356 = vand.u32 %v1355, 4294901760
      %1357 = vmatmul.f32.gmra.mxu0 %v1356
      %v1358 = vpop.f32.mrf.mxu0
      %v1359 = vadd.f32 %v1315, %v1358
      %v1360 = vand.u32 %v1169, 4294901760
      %v1361 = vsub.f32 %v1169, %v1360
      %v1362 = vand.u32 %v1361, 4294901760
      %1363 = vmatmul.f32.gmra.mxu0 %v1362
      %v1364 = vpop.f32.mrf.mxu0
      %v1365 = vadd.f32 %v1320, %v1364
      %1366 = vdwg.mxu0
      %1367 = vmatpush.msra.mxu0 0.0
      %1368 = vmatpush.msra.mxu0 0.0
      %1369 = vmatpush.msra.mxu0 0.0
      %1370 = vmatpush.msra.mxu0 0.0
      %1371 = vmatpush.msra.mxu0 0.0
      %1372 = vmatpush.msra.mxu0 0.0
      %1373 = vmatpush.msra.mxu0 0.0
      %1374 = vmatpush.msra.mxu0 0.0
      %1375 = vmatpush.msra.mxu0 0.0
      %1376 = vmatpush.msra.mxu0 0.0
      %1377 = vmatpush.msra.mxu0 0.0
      %1378 = vmatpush.msra.mxu0 0.0
      %v1379 = vand.u32 %v1137, 4294901760
      %v1380 = vsub.f32 %v1137, %v1379
      %v1381 = vand.u32 %v1380, 4294901760
      %1382 = vmatpush.msra.mxu0 %v1381
      %v1383 = vand.u32 %v1135, 4294901760
      %v1384 = vsub.f32 %v1135, %v1383
      %v1385 = vand.u32 %v1384, 4294901760
      %1386 = vmatpush.msra.mxu0 %v1385
      %v1387 = vand.u32 %v1133, 4294901760
      %v1388 = vsub.f32 %v1133, %v1387
      %v1389 = vand.u32 %v1388, 4294901760
      %1390 = vmatpush.msra.mxu0 %v1389
      %v1391 = vand.u32 %v1131, 4294901760
      %v1392 = vsub.f32 %v1131, %v1391
      %v1393 = vand.u32 %v1392, 4294901760
      %1394 = vmatpush.msra.mxu0 %v1393
      %v1395 = vand.u32 %v1160, 4294901760
      %1396 = vmatmul.f32.gmra.mxu0 %v1395
      %v1397 = vpop.f32.mrf.mxu0
      %v1398 = vadd.f32 %v1347, %v1397
      %v1399 = vand.u32 %v1163, 4294901760
      %1400 = vmatmul.f32.gmra.mxu0 %v1399
      %v1401 = vpop.f32.mrf.mxu0
      %v1402 = vadd.f32 %v1353, %v1401
      %v1403 = vand.u32 %v1166, 4294901760
      %1404 = vmatmul.f32.gmra.mxu0 %v1403
      %v1405 = vpop.f32.mrf.mxu0
      %v1406 = vadd.f32 %v1359, %v1405
      %v1407 = vand.u32 %v1169, 4294901760
      %1408 = vmatmul.f32.gmra.mxu0 %v1407
      %v1409 = vpop.f32.mrf.mxu0
      %v1410 = vadd.f32 %v1365, %v1409
      %1411 = vdwg.mxu0
      %1412 = vmatpush.msra.mxu0 0.0
      %1413 = vmatpush.msra.mxu0 0.0
      %1414 = vmatpush.msra.mxu0 0.0
      %1415 = vmatpush.msra.mxu0 0.0
      %1416 = vmatpush.msra.mxu0 0.0
      %1417 = vmatpush.msra.mxu0 0.0
      %1418 = vmatpush.msra.mxu0 0.0
      %1419 = vmatpush.msra.mxu0 0.0
      %1420 = vmatpush.msra.mxu0 0.0
      %1421 = vmatpush.msra.mxu0 0.0
      %1422 = vmatpush.msra.mxu0 0.0
      %1423 = vmatpush.msra.mxu0 0.0
      %v1424 = vand.u32 %v1137, 4294901760
      %1425 = vmatpush.msra.mxu0 %v1424
      %v1426 = vand.u32 %v1135, 4294901760
      %1427 = vmatpush.msra.mxu0 %v1426
      %v1428 = vand.u32 %v1133, 4294901760
      %1429 = vmatpush.msra.mxu0 %v1428
      %v1430 = vand.u32 %v1131, 4294901760
      %1431 = vmatpush.msra.mxu0 %v1430
      %v1432 = vand.u32 %v1160, 4294901760
      %1433 = vmatmul.f32.gmra.mxu0 %v1432
      %v1434 = vpop.f32.mrf.mxu0
      %v1435 = vadd.f32 %v1398, %v1434
      %v1436 = vand.u32 %v1163, 4294901760
      %1437 = vmatmul.f32.gmra.mxu0 %v1436
      %v1438 = vpop.f32.mrf.mxu0
      %v1439 = vadd.f32 %v1402, %v1438
      %v1440 = vand.u32 %v1166, 4294901760
      %1441 = vmatmul.f32.gmra.mxu0 %v1440
      %v1442 = vpop.f32.mrf.mxu0
      %v1443 = vadd.f32 %v1406, %v1442
      %v1444 = vand.u32 %v1169, 4294901760
      %1445 = vmatmul.f32.gmra.mxu0 %v1444
      %v1446 = vpop.f32.mrf.mxu0
      %v1447 = vadd.f32 %v1410, %v1446
      %1448 = vdwg.mxu0
      %1449 = vmatpush.msra.mxu0 0.0
      %1450 = vmatpush.msra.mxu0 0.0
      %1451 = vmatpush.msra.mxu0 0.0
      %1452 = vmatpush.msra.mxu0 0.0
      %1453 = vmatpush.msra.mxu0 0.0
      %1454 = vmatpush.msra.mxu0 0.0
      %1455 = vmatpush.msra.mxu0 0.0
      %1456 = vmatpush.msra.mxu0 0.0
      %1457 = vmatpush.msra.mxu0 0.0
      %1458 = vmatpush.msra.mxu0 0.0
      %1459 = vmatpush.msra.mxu0 0.0
      %1460 = vmatpush.msra.mxu0 0.0
      %v1461 = vand.u32 %v1138, 4294901760
      %1462 = vmatpush.msra.mxu0 %v1461
      %v1463 = vand.u32 %v1136, 4294901760
      %1464 = vmatpush.msra.mxu0 %v1463
      %v1465 = vand.u32 %v1134, 4294901760
      %1466 = vmatpush.msra.mxu0 %v1465
      %v1467 = vand.u32 %v1132, 4294901760
      %1468 = vmatpush.msra.mxu0 %v1467
      %v1469 = vand.u32 %v1160, 4294901760
      %v1470 = vsub.f32 %v1160, %v1469
      %v1471 = vand.u32 %v1470, 4294901760
      %v1472 = vsub.f32 %v1470, %v1471
      %v1473 = vand.u32 %v1472, 4294901760
      %1474 = vmatmul.f32.gmra.mxu0 %v1473
      %v1475 = vpop.f32.mrf.mxu0
      %v1476 = vadd.f32 %v1145, %v1475
      %v1477 = vand.u32 %v1163, 4294901760
      %v1478 = vsub.f32 %v1163, %v1477
      %v1479 = vand.u32 %v1478, 4294901760
      %v1480 = vsub.f32 %v1478, %v1479
      %v1481 = vand.u32 %v1480, 4294901760
      %1482 = vmatmul.f32.gmra.mxu0 %v1481
      %v1483 = vpop.f32.mrf.mxu0
      %v1484 = vadd.f32 %v1149, %v1483
      %v1485 = vand.u32 %v1166, 4294901760
      %v1486 = vsub.f32 %v1166, %v1485
      %v1487 = vand.u32 %v1486, 4294901760
      %v1488 = vsub.f32 %v1486, %v1487
      %v1489 = vand.u32 %v1488, 4294901760
      %1490 = vmatmul.f32.gmra.mxu0 %v1489
      %v1491 = vpop.f32.mrf.mxu0
      %v1492 = vadd.f32 %v1153, %v1491
      %v1493 = vand.u32 %v1169, 4294901760
      %v1494 = vsub.f32 %v1169, %v1493
      %v1495 = vand.u32 %v1494, 4294901760
      %v1496 = vsub.f32 %v1494, %v1495
      %v1497 = vand.u32 %v1496, 4294901760
      %1498 = vmatmul.f32.gmra.mxu0 %v1497
      %v1499 = vpop.f32.mrf.mxu0
      %v1500 = vadd.f32 %v1157, %v1499
      %1501 = vdwg.mxu0
      %1502 = vmatpush.msra.mxu0 0.0
      %1503 = vmatpush.msra.mxu0 0.0
      %1504 = vmatpush.msra.mxu0 0.0
      %1505 = vmatpush.msra.mxu0 0.0
      %1506 = vmatpush.msra.mxu0 0.0
      %1507 = vmatpush.msra.mxu0 0.0
      %1508 = vmatpush.msra.mxu0 0.0
      %1509 = vmatpush.msra.mxu0 0.0
      %1510 = vmatpush.msra.mxu0 0.0
      %1511 = vmatpush.msra.mxu0 0.0
      %1512 = vmatpush.msra.mxu0 0.0
      %1513 = vmatpush.msra.mxu0 0.0
      %v1514 = vand.u32 %v1138, 4294901760
      %v1515 = vsub.f32 %v1138, %v1514
      %v1516 = vand.u32 %v1515, 4294901760
      %v1517 = vsub.f32 %v1515, %v1516
      %v1518 = vand.u32 %v1517, 4294901760
      %1519 = vmatpush.msra.mxu0 %v1518
      %v1520 = vand.u32 %v1136, 4294901760
      %v1521 = vsub.f32 %v1136, %v1520
      %v1522 = vand.u32 %v1521, 4294901760
      %v1523 = vsub.f32 %v1521, %v1522
      %v1524 = vand.u32 %v1523, 4294901760
      %1525 = vmatpush.msra.mxu0 %v1524
      %v1526 = vand.u32 %v1134, 4294901760
      %v1527 = vsub.f32 %v1134, %v1526
      %v1528 = vand.u32 %v1527, 4294901760
      %v1529 = vsub.f32 %v1527, %v1528
      %v1530 = vand.u32 %v1529, 4294901760
      %1531 = vmatpush.msra.mxu0 %v1530
      %v1532 = vand.u32 %v1132, 4294901760
      %v1533 = vsub.f32 %v1132, %v1532
      %v1534 = vand.u32 %v1533, 4294901760
      %v1535 = vsub.f32 %v1533, %v1534
      %v1536 = vand.u32 %v1535, 4294901760
      %1537 = vmatpush.msra.mxu0 %v1536
      %v1538 = vand.u32 %v1160, 4294901760
      %1539 = vmatmul.f32.gmra.mxu0 %v1538
      %v1540 = vpop.f32.mrf.mxu0
      %v1541 = vadd.f32 %v1476, %v1540
      %v1542 = vand.u32 %v1163, 4294901760
      %1543 = vmatmul.f32.gmra.mxu0 %v1542
      %v1544 = vpop.f32.mrf.mxu0
      %v1545 = vadd.f32 %v1484, %v1544
      %v1546 = vand.u32 %v1166, 4294901760
      %1547 = vmatmul.f32.gmra.mxu0 %v1546
      %v1548 = vpop.f32.mrf.mxu0
      %v1549 = vadd.f32 %v1492, %v1548
      %v1550 = vand.u32 %v1169, 4294901760
      %1551 = vmatmul.f32.gmra.mxu0 %v1550
      %v1552 = vpop.f32.mrf.mxu0
      %v1553 = vadd.f32 %v1500, %v1552
      %1554 = vdwg.mxu0
      %1555 = vmatpush.msra.mxu0 0.0
      %1556 = vmatpush.msra.mxu0 0.0
      %1557 = vmatpush.msra.mxu0 0.0
      %1558 = vmatpush.msra.mxu0 0.0
      %1559 = vmatpush.msra.mxu0 0.0
      %1560 = vmatpush.msra.mxu0 0.0
      %1561 = vmatpush.msra.mxu0 0.0
      %1562 = vmatpush.msra.mxu0 0.0
      %1563 = vmatpush.msra.mxu0 0.0
      %1564 = vmatpush.msra.mxu0 0.0
      %1565 = vmatpush.msra.mxu0 0.0
      %1566 = vmatpush.msra.mxu0 0.0
      %v1567 = vand.u32 %v1138, 4294901760
      %v1568 = vsub.f32 %v1138, %v1567
      %1569 = vmatpush.msra.mxu0 %v1568
      %v1570 = vand.u32 %v1136, 4294901760
      %v1571 = vsub.f32 %v1136, %v1570
      %1572 = vmatpush.msra.mxu0 %v1571
      %v1573 = vand.u32 %v1134, 4294901760
      %v1574 = vsub.f32 %v1134, %v1573
      %1575 = vmatpush.msra.mxu0 %v1574
      %v1576 = vand.u32 %v1132, 4294901760
      %v1577 = vsub.f32 %v1132, %v1576
      %1578 = vmatpush.msra.mxu0 %v1577
      %v1579 = vand.u32 %v1160, 4294901760
      %v1580 = vsub.f32 %v1160, %v1579
      %1581 = vmatmul.f32.gmra.mxu0 %v1580
      %v1582 = vpop.f32.mrf.mxu0
      %v1583 = vadd.f32 %v1541, %v1582
      %v1584 = vand.u32 %v1163, 4294901760
      %v1585 = vsub.f32 %v1163, %v1584
      %1586 = vmatmul.f32.gmra.mxu0 %v1585
      %v1587 = vpop.f32.mrf.mxu0
      %v1588 = vadd.f32 %v1545, %v1587
      %v1589 = vand.u32 %v1166, 4294901760
      %v1590 = vsub.f32 %v1166, %v1589
      %1591 = vmatmul.f32.gmra.mxu0 %v1590
      %v1592 = vpop.f32.mrf.mxu0
      %v1593 = vadd.f32 %v1549, %v1592
      %v1594 = vand.u32 %v1169, 4294901760
      %v1595 = vsub.f32 %v1169, %v1594
      %1596 = vmatmul.f32.gmra.mxu0 %v1595
      %v1597 = vpop.f32.mrf.mxu0
      %v1598 = vadd.f32 %v1553, %v1597
      %1599 = vdwg.mxu0
      %1600 = vmatpush.msra.mxu0 0.0
      %1601 = vmatpush.msra.mxu0 0.0
      %1602 = vmatpush.msra.mxu0 0.0
      %1603 = vmatpush.msra.mxu0 0.0
      %1604 = vmatpush.msra.mxu0 0.0
      %1605 = vmatpush.msra.mxu0 0.0
      %1606 = vmatpush.msra.mxu0 0.0
      %1607 = vmatpush.msra.mxu0 0.0
      %1608 = vmatpush.msra.mxu0 0.0
      %1609 = vmatpush.msra.mxu0 0.0
      %1610 = vmatpush.msra.mxu0 0.0
      %1611 = vmatpush.msra.mxu0 0.0
      %v1612 = vand.u32 %v1138, 4294901760
      %1613 = vmatpush.msra.mxu0 %v1612
      %v1614 = vand.u32 %v1136, 4294901760
      %1615 = vmatpush.msra.mxu0 %v1614
      %v1616 = vand.u32 %v1134, 4294901760
      %1617 = vmatpush.msra.mxu0 %v1616
      %v1618 = vand.u32 %v1132, 4294901760
      %1619 = vmatpush.msra.mxu0 %v1618
      %v1620 = vand.u32 %v1160, 4294901760
      %v1621 = vsub.f32 %v1160, %v1620
      %v1622 = vand.u32 %v1621, 4294901760
      %1623 = vmatmul.f32.gmra.mxu0 %v1622
      %v1624 = vpop.f32.mrf.mxu0
      %v1625 = vadd.f32 %v1583, %v1624
      %v1626 = vand.u32 %v1163, 4294901760
      %v1627 = vsub.f32 %v1163, %v1626
      %v1628 = vand.u32 %v1627, 4294901760
      %1629 = vmatmul.f32.gmra.mxu0 %v1628
      %v1630 = vpop.f32.mrf.mxu0
      %v1631 = vadd.f32 %v1588, %v1630
      %v1632 = vand.u32 %v1166, 4294901760
      %v1633 = vsub.f32 %v1166, %v1632
      %v1634 = vand.u32 %v1633, 4294901760
      %1635 = vmatmul.f32.gmra.mxu0 %v1634
      %v1636 = vpop.f32.mrf.mxu0
      %v1637 = vadd.f32 %v1593, %v1636
      %v1638 = vand.u32 %v1169, 4294901760
      %v1639 = vsub.f32 %v1169, %v1638
      %v1640 = vand.u32 %v1639, 4294901760
      %1641 = vmatmul.f32.gmra.mxu0 %v1640
      %v1642 = vpop.f32.mrf.mxu0
      %v1643 = vadd.f32 %v1598, %v1642
      %1644 = vdwg.mxu0
      %1645 = vmatpush.msra.mxu0 0.0
      %1646 = vmatpush.msra.mxu0 0.0
      %1647 = vmatpush.msra.mxu0 0.0
      %1648 = vmatpush.msra.mxu0 0.0
      %1649 = vmatpush.msra.mxu0 0.0
      %1650 = vmatpush.msra.mxu0 0.0
      %1651 = vmatpush.msra.mxu0 0.0
      %1652 = vmatpush.msra.mxu0 0.0
      %1653 = vmatpush.msra.mxu0 0.0
      %1654 = vmatpush.msra.mxu0 0.0
      %1655 = vmatpush.msra.mxu0 0.0
      %1656 = vmatpush.msra.mxu0 0.0
      %v1657 = vand.u32 %v1138, 4294901760
      %v1658 = vsub.f32 %v1138, %v1657
      %v1659 = vand.u32 %v1658, 4294901760
      %1660 = vmatpush.msra.mxu0 %v1659
      %v1661 = vand.u32 %v1136, 4294901760
      %v1662 = vsub.f32 %v1136, %v1661
      %v1663 = vand.u32 %v1662, 4294901760
      %1664 = vmatpush.msra.mxu0 %v1663
      %v1665 = vand.u32 %v1134, 4294901760
      %v1666 = vsub.f32 %v1134, %v1665
      %v1667 = vand.u32 %v1666, 4294901760
      %1668 = vmatpush.msra.mxu0 %v1667
      %v1669 = vand.u32 %v1132, 4294901760
      %v1670 = vsub.f32 %v1132, %v1669
      %v1671 = vand.u32 %v1670, 4294901760
      %1672 = vmatpush.msra.mxu0 %v1671
      %v1673 = vand.u32 %v1160, 4294901760
      %1674 = vmatmul.f32.gmra.mxu0 %v1673
      %v1675 = vpop.f32.mrf.mxu0
      %v1676 = vadd.f32 %v1625, %v1675
      %v1677 = vand.u32 %v1163, 4294901760
      %1678 = vmatmul.f32.gmra.mxu0 %v1677
      %v1679 = vpop.f32.mrf.mxu0
      %v1680 = vadd.f32 %v1631, %v1679
      %v1681 = vand.u32 %v1166, 4294901760
      %1682 = vmatmul.f32.gmra.mxu0 %v1681
      %v1683 = vpop.f32.mrf.mxu0
      %v1684 = vadd.f32 %v1637, %v1683
      %v1685 = vand.u32 %v1169, 4294901760
      %1686 = vmatmul.f32.gmra.mxu0 %v1685
      %v1687 = vpop.f32.mrf.mxu0
      %v1688 = vadd.f32 %v1643, %v1687
      %1689 = vdwg.mxu0
      %1690 = vmatpush.msra.mxu0 0.0
      %1691 = vmatpush.msra.mxu0 0.0
      %1692 = vmatpush.msra.mxu0 0.0
      %1693 = vmatpush.msra.mxu0 0.0
      %1694 = vmatpush.msra.mxu0 0.0
      %1695 = vmatpush.msra.mxu0 0.0
      %1696 = vmatpush.msra.mxu0 0.0
      %1697 = vmatpush.msra.mxu0 0.0
      %1698 = vmatpush.msra.mxu0 0.0
      %1699 = vmatpush.msra.mxu0 0.0
      %1700 = vmatpush.msra.mxu0 0.0
      %1701 = vmatpush.msra.mxu0 0.0
      %v1702 = vand.u32 %v1138, 4294901760
      %1703 = vmatpush.msra.mxu0 %v1702
      %v1704 = vand.u32 %v1136, 4294901760
      %1705 = vmatpush.msra.mxu0 %v1704
      %v1706 = vand.u32 %v1134, 4294901760
      %1707 = vmatpush.msra.mxu0 %v1706
      %v1708 = vand.u32 %v1132, 4294901760
      %1709 = vmatpush.msra.mxu0 %v1708
      %v1710 = vand.u32 %v1160, 4294901760
      %1711 = vmatmul.f32.gmra.mxu0 %v1710
      %v1712 = vpop.f32.mrf.mxu0
      %v1713 = vadd.f32 %v1676, %v1712
      %v1714 = vand.u32 %v1163, 4294901760
      %1715 = vmatmul.f32.gmra.mxu0 %v1714
      %v1716 = vpop.f32.mrf.mxu0
      %v1717 = vadd.f32 %v1680, %v1716
      %v1718 = vand.u32 %v1166, 4294901760
      %1719 = vmatmul.f32.gmra.mxu0 %v1718
      %v1720 = vpop.f32.mrf.mxu0
      %v1721 = vadd.f32 %v1684, %v1720
      %v1722 = vand.u32 %v1169, 4294901760
      %1723 = vmatmul.f32.gmra.mxu0 %v1722
      %v1724 = vpop.f32.mrf.mxu0
      %v1725 = vadd.f32 %v1688, %v1724
      %1726 = vdwg.mxu0
      %1727 = vst [vmem:[%s295] sm:$0xff] %v1435
      %1728 = vst [vmem:[%s295 + $0x8] sm:$0xff] %v1713
      %1729 = vst [vmem:[%s295 + $0x10] sm:$0xff] %v1439
      %1730 = vst [vmem:[%s295 + $0x18] sm:$0xff] %v1717
      %1731 = vst [vmem:[%s295 + $0x20] sm:$0xff] %v1443
      %1732 = vst [vmem:[%s295 + $0x28] sm:$0xff] %v1721
      %1733 = vst [vmem:[%s295 + $0x30] sm:$0xff] %v1447
      %1734 = vst [vmem:[%s295 + $0x38] sm:$0xff] %v1725
      %s1735 = smul.u32 2, %s21
      %p1736 = scmp.lt.s32.totalorder %s20, 1
      %s1737 = scalar_select %p1736, %s20, 1
      %p1738 = scmp.lt.s32.totalorder %s1735, 1
      %s1739 = scalar_select %p1738, %s1735, 1
      %s1740 = smul.addr %s1737, 8
      %s1741 = sadd.s32 %s1739, %s1740
      %s1742 = smul.addr %s1741, 8
      %s1743 = scalar_lea.vmem %s5, %s1742
      // Predicated region
      $region41: #{gated_spatial_conv2d.1} parent=39 // pred_check
        %p1744 = pneg %p167
      $region42: #{gated_spatial_conv2d.1} parent=39 // pred_check_branch
        %1746 = sbr.rel (%p1744) target = $region44
      $region43: #{gated_spatial_conv2d.1} parent=39 // pred_region
        %s1747 = smul.u32 2, %s21
      $region44: #{gated_spatial_conv2d.1} parent=39 // pred_fallthru
        _
    $region40: #{gated_spatial_conv2d.1} parent=5 // pred_fallthru
      _
    %p1748 = scmp.le.s32.totalorder 2, %s11
    // Predicated region
    $region45: #{gated_spatial_conv2d.1} parent=5 // pred_check
      %p1749 = pneg %p1748
    $region46: #{gated_spatial_conv2d.1} parent=5 // pred_check_branch
      %1751 = sbr.rel (%p1749) target = $region48
    $region47: #{gated_spatial_conv2d.1} parent=5 // pred_region
      %s1752 = ssub.s32 %s11, 2
      // Predicated region
      $region49: #{gated_spatial_conv2d.1} parent=47 // pred_check
        %p1753 = pneg %p173
      $region50: #{gated_spatial_conv2d.1} parent=47 // pred_check_branch
        %1755 = sbr.rel (%p1753) target = $region52
      $region51: #{gated_spatial_conv2d.1} parent=47 // pred_region
        %s1756 = smul.u32 2, %s23
        %p1757 = scmp.lt.s32.totalorder %s22, 1
        %s1758 = scalar_select %p1757, %s22, 1
        %p1759 = scmp.lt.s32.totalorder %s1756, 1
        %s1760 = scalar_select %p1759, %s1756, 1
        %s1761 = smul.addr %s1758, 8
        %s1762 = sadd.s32 %s1760, %s1761
        %s1763 = smul.addr %s1762, 8
        %s1764 = scalar_lea.vmem %s5, %s1763
      $region52: #{gated_spatial_conv2d.1} parent=47 // pred_fallthru
        _
    $region48: #{gated_spatial_conv2d.1} parent=5 // pred_fallthru
      _
  $region6: #{gated_spatial_conv2d.1} parent=0 // loop_footer
    %s15 = sadd.s32 1, %s11
  $region7: #{gated_spatial_conv2d.1} parent=0 // loop_footer_branch
    %10 = sbr.rel target = $region3
  $region8: #{gated_spatial_conv2d.1} parent=0 // loop_exit
    _

</llo_original>
